<compile_context>
chip_gen: v6e
topology: v6e:2x2x1
jax: 0.10.0
libtpu: 0.0.40
codegen_flags: <defaults>
</compile_context>

<pallas_src>
import functools

import numpy as np
import jax
import jax.numpy as jnp
from jax import lax
from jax.experimental import pallas as pl
from jax.experimental.pallas import tpu as pltpu


# ----------------------------------------------------------------------------
# Fused kernel: (optional 2x2 maxpool) + 3x3 conv (padding=1) + bias + ReLU
# ----------------------------------------------------------------------------

def _udown_kernel(x_ref, w_ref, b_ref, o_ref, *, pool, b_tile, Hh, Wh, cin, cout_pad):
    """One batch tile, NHWC layout (channels on TPU lanes).

    x_ref : (b_tile, H, W, cin)          f32   (H,W = 2*Hh,2*Wh when pool, else Hh,Wh)
    w_ref : (9, cin, cout_pad)           bf16  tap index k = 3*ky + kx
    b_ref : (1, cout_pad)                f32
    o_ref : (b_tile, Hh, Wh, cout_pad)   f32   lane-dense (cout_pad % 128 == 0)
    """
    x = x_ref[...]                                           # (b_tile, H, W, cin)

    if pool:
        # 2x2 / stride-2 max pool via split-and-reduce (floor behavior like MaxPool2d(2)).
        x = x[:, :2 * Hh, :2 * Wh]
        r = jnp.max(x.reshape(b_tile, Hh, 2, 2 * Wh, cin), axis=2)
        p = jnp.max(r.reshape(b_tile, Hh, Wh, 2, cin), axis=3)
    else:
        p = x                                                # (b_tile, Hh, Wh, cin)

    # Zero padding only along H (outer, non-tiled axis -> cheap aligned copies).
    zrow = jnp.zeros((b_tile, 1, Wh, cin), jnp.float32)
    ph = jnp.concatenate([zrow, p, zrow], axis=1)            # (b_tile, Hh+2, Wh, cin)

    # Three W-shifted variants via XLU roll + border mask (no offset sublane stores).
    w_ids = lax.broadcasted_iota(jnp.int32, (b_tile, Hh + 2, Wh, cin), 2)
    q_m1 = jnp.where(w_ids >= 1, pltpu.roll(ph, 1, axis=2), 0.0)            # col w-1
    q_p1 = jnp.where(w_ids <= Wh - 2, pltpu.roll(ph, Wh - 1, axis=2), 0.0)  # col w+1
    q = (q_m1, ph, q_p1)                                     # index = kx (dx = kx-1)

    # 9 accumulated MXU matmuls (bf16 in, f32 accumulate) instead of a lane-axis im2col.
    M = b_tile * Hh * Wh
    acc = jnp.zeros((M, cout_pad), jnp.float32)
    for ky in range(3):
        for kx in range(3):
            tap = q[kx][:, ky:ky + Hh].reshape(M, cin).astype(jnp.bfloat16)
            acc += jnp.dot(tap, w_ref[3 * ky + kx],
                           preferred_element_type=jnp.float32)

    y = jnp.maximum(acc + b_ref[...], 0.0)                   # bias + ReLU in f32
    o_ref[...] = y.reshape(b_tile, Hh, Wh, cout_pad)         # unmasked 128-lane stores


# ----------------------------------------------------------------------------
# Wrapper: NCHW in / NCHW out, PyTorch-layout weights
# ----------------------------------------------------------------------------

def _pick_b_tile(N, Hh, Wh):
    # Batch several images per grid step to raise MXU M, but keep >= 2 grid steps
    # so the BlockSpec double-buffer pipeline overlaps DMA with compute (v7x: 2 TCs).
    bt = 1
    for c in range(1, N + 1):
        if N % c == 0 and c * Hh * Wh <= 512 and N // c >= 2:
            bt = c
    return bt


def udown_forward(x_nchw, w_oihw, b, *, bStart=False):
    """UDown.forward.

    x_nchw: (N, Cin, H, W) float32   (PyTorch layout)
    w_oihw: (Cout, Cin, 3, 3)        (PyTorch Conv2d weight layout)
    b     : (Cout,)
    Returns (N, Cout, Hh, Wh) with Hh,Wh = H//2,W//2 unless bStart (no pool).
    """
    x = jnp.transpose(x_nchw, (0, 2, 3, 1))                  # NCHW -> NHWC
    N, H, W, cin = x.shape
    cout = w_oihw.shape[0]
    Hh, Wh = (H, W) if bStart else (H // 2, W // 2)
    cout_pad = ((cout + 127) // 128) * 128                   # lane-dense output columns

    # (Cout,Cin,3,3) -> (ky,kx,ci,co) -> (9,Cin,Cout) -> pad Cout to 128 -> bf16 MXU feed
    w9 = jnp.transpose(w_oihw, (2, 3, 1, 0)).reshape(9, cin, cout)
    w9 = jnp.pad(w9, ((0, 0), (0, 0), (0, cout_pad - cout))).astype(jnp.bfloat16)
    b2 = jnp.pad(b, (0, cout_pad - cout)).reshape(1, cout_pad).astype(jnp.float32)

    b_tile = _pick_b_tile(N, Hh, Wh)
    kernel = functools.partial(_udown_kernel, pool=not bStart, b_tile=b_tile,
                               Hh=Hh, Wh=Wh, cin=cin, cout_pad=cout_pad)

    out = pl.pallas_call(
        kernel,
        out_shape=jax.ShapeDtypeStruct((N, Hh, Wh, cout_pad), jnp.float32),
        grid=(N // b_tile,),
        in_specs=[
            pl.BlockSpec((b_tile, H, W, cin), lambda n: (n, 0, 0, 0)),
            pl.BlockSpec((9, cin, cout_pad), lambda n: (0, 0, 0)),
            pl.BlockSpec((1, cout_pad), lambda n: (0, 0)),
        ],
        out_specs=pl.BlockSpec((b_tile, Hh, Wh, cout_pad), lambda n: (n, 0, 0, 0)),
        # batch axis "parallel" so v7x shards it across its 2 TensorCores
        compiler_params=pltpu.CompilerParams(dimension_semantics=("parallel",)),
    )(x, w9, b2)

    out = out[..., :cout]                                    # drop lane padding
    return jnp.transpose(out, (0, 3, 1, 2))                  # NHWC -> NCHW


# ----------------------------------------------------------------------------
# Pure-JAX reference (mirrors the PyTorch module) for a self-check
# ----------------------------------------------------------------------------

def udown_reference(x_nchw, w_oihw, b, *, bStart=False):
    x = x_nchw
    if not bStart:
        x = lax.reduce_window(x, jnp.float32(-jnp.inf), lax.max,
                              (1, 1, 2, 2), (1, 1, 2, 2), "VALID")
    y = lax.conv_general_dilated(x, w_oihw, window_strides=(1, 1), padding="SAME",
                                 dimension_numbers=("NCHW", "OIHW", "NCHW"))
    return jnp.maximum(y + b.reshape(1, -1, 1, 1), 0.0)


# ----------------------------------------------------------------------------
# Main
# ----------------------------------------------------------------------------

if __name__ == "__main__":
    key = jax.random.PRNGKey(0)
    kx, kw, kb = jax.random.split(key, 3)

    N, Cin, H, W, Cout = 2, 4, 16, 16, 32
    x = jax.random.normal(kx, (N, Cin, H, W), jnp.float32)
    w = jax.random.normal(kw, (Cout, Cin, 3, 3), jnp.float32) / np.sqrt(9.0 * Cin)
    b = jax.random.normal(kb, (Cout,), jnp.float32) * 0.01

    # Default UDown path: UberPool (MaxPool2d(2)) + Conv3x3 + ReLU
    fwd = jax.jit(functools.partial(udown_forward, bStart=False))
    out = jax.block_until_ready(fwd(x, w, b))
    assert out.shape == (N, Cout, H // 2, W // 2), out.shape
    assert bool(jnp.all(jnp.isfinite(out)))
    ref = udown_reference(x, w, b, bStart=False)
    err = float(jnp.max(jnp.abs(out - ref)))
    assert err < 1e-1, err                                   # bf16 MXU inputs

    # bStart=True path: Conv3x3 + ReLU only (no pool)
    fwd_s = jax.jit(functools.partial(udown_forward, bStart=True))
    out_s = jax.block_until_ready(fwd_s(x, w, b))
    assert out_s.shape == (N, Cout, H, W), out_s.shape
    ref_s = udown_reference(x, w, b, bStart=True)
    err_s = float(jnp.max(jnp.abs(out_s - ref_s)))
    assert err_s < 1e-1, err_s

    print("KERNEL_OK")
</pallas_src>

<mosaic_0001>
module attributes {stable_mosaic.version = 11 : i64} {
  func.func @_udown_kernel(%arg0: i32, %arg1: memref<1x16x16x4xf32, #tpu.memory_space<vmem>>, %arg2: memref<9x4x128xbf16, #tpu.memory_space<vmem>>, %arg3: memref<1x128xf32, #tpu.memory_space<vmem>>, %arg4: memref<1x8x8x128xf32, #tpu.memory_space<vmem>>) attributes {dimension_semantics = [#tpu.dimension_semantics<parallel>], iteration_bounds = array<i64: 2>, scalar_prefetch = 0 : i64, scratch_operands = 0 : i64, tpu.core_type = #tpu.core_type<tc>, window_params = [{transform_indices = @transform_0, window_bounds = array<i64: 1, 16, 16, 4>}, {pipeline_mode = #tpu.pipeline_mode<synchronous>, transform_indices = @transform_1, window_bounds = array<i64: 9, 4, 128>}, {pipeline_mode = #tpu.pipeline_mode<synchronous>, transform_indices = @transform_2, window_bounds = array<i64: 1, 128>}, {transform_indices = @transform_3, window_bounds = array<i64: 1, 8, 8, 128>}]} {
    %c0 = arith.constant 0 : index
    %c0_0 = arith.constant 0 : index
    %c0_1 = arith.constant 0 : index
    %c0_2 = arith.constant 0 : index
    %0 = vector.load %arg1[%c0, %c0_0, %c0_1, %c0_2] : memref<1x16x16x4xf32, #tpu.memory_space<vmem>>, vector<1x16x16x4xf32>
    %1 = vector.shape_cast %0 : vector<1x16x16x4xf32> to vector<1x8x2x16x4xf32>
    %cst = arith.constant dense<0xFF800000> : vector<1x8x16x4xf32>
    %2 = vector.multi_reduction <maximumf>, %1, %cst [2] : vector<1x8x2x16x4xf32> to vector<1x8x16x4xf32>
    %3 = vector.shape_cast %2 : vector<1x8x16x4xf32> to vector<1x8x8x2x4xf32>
    %cst_3 = arith.constant dense<0xFF800000> : vector<1x8x8x4xf32>
    %4 = vector.multi_reduction <maximumf>, %3, %cst_3 [3] : vector<1x8x8x2x4xf32> to vector<1x8x8x4xf32>
    %cst_4 = arith.constant 0.000000e+00 : f32
    %5 = vector.broadcast %cst_4 : f32 to vector<1x1x8x4xf32>
    %6 = tpu.concatenate %5, %4, %5 in 1 : vector<1x1x8x4xf32>, vector<1x8x8x4xf32>, vector<1x1x8x4xf32> -> vector<1x10x8x4xf32>
    %7 = tpu.iota {dimensions = array<i32: 2>} : vector<1x10x8x4xi32>
    %c1_i32 = arith.constant 1 : i32
    %8 = vector.broadcast %c1_i32 : i32 to vector<1x10x8x4xi32>
    %9 = arith.cmpi sge, %7, %8 : vector<1x10x8x4xi32>
    %c1_i32_5 = arith.constant 1 : i32
    %10 = tpu.dynamic_rotate %6 by %c1_i32_5 dim 2 : vector<1x10x8x4xf32>, i32 -> vector<1x10x8x4xf32>
    %cst_6 = arith.constant 0.000000e+00 : f32
    %11 = vector.broadcast %cst_6 : f32 to vector<1x10x8x4xf32>
    %12 = arith.select %9, %10, %11 : vector<1x10x8x4xi1>, vector<1x10x8x4xf32>
    %c6_i32 = arith.constant 6 : i32
    %13 = vector.broadcast %c6_i32 : i32 to vector<1x10x8x4xi32>
    %14 = arith.cmpi sle, %7, %13 : vector<1x10x8x4xi32>
    %c7_i32 = arith.constant 7 : i32
    %15 = tpu.dynamic_rotate %6 by %c7_i32 dim 2 : vector<1x10x8x4xf32>, i32 -> vector<1x10x8x4xf32>
    %cst_7 = arith.constant 0.000000e+00 : f32
    %16 = vector.broadcast %cst_7 : f32 to vector<1x10x8x4xf32>
    %17 = arith.select %14, %15, %16 : vector<1x10x8x4xi1>, vector<1x10x8x4xf32>
    %cst_8 = arith.constant 0.000000e+00 : f32
    %18 = vector.broadcast %cst_8 : f32 to vector<64x128xf32>
    %19 = vector.extract_strided_slice %12 {offsets = [0, 0, 0, 0], sizes = [1, 8, 8, 4], strides = [1, 1, 1, 1]} : vector<1x10x8x4xf32> to vector<1x8x8x4xf32>
    %20 = vector.shape_cast %19 : vector<1x8x8x4xf32> to vector<64x4xf32>
    %21 = arith.truncf %20 : vector<64x4xf32> to vector<64x4xbf16>
    %c0_9 = arith.constant 0 : index
    %c0_10 = arith.constant 0 : index
    %c0_11 = arith.constant 0 : index
    %22 = vector.load %arg2[%c0_9, %c0_10, %c0_11] : memref<9x4x128xbf16, #tpu.memory_space<vmem>>, vector<1x4x128xbf16>
    %23 = vector.shape_cast %22 : vector<1x4x128xbf16> to vector<4x128xbf16>
    %cst_12 = arith.constant dense<0.000000e+00> : vector<64x128xf32>
    %24 = tpu.matmul %21, %23, %cst_12 {dimension_numbers = #tpu.dot_dimension_numbers<[1], [0], [0], [1], [0, 0, 1, 1], [], []>} : vector<64x4xbf16>, vector<4x128xbf16>, vector<64x128xf32> -> vector<64x128xf32>
    %25 = arith.addf %18, %24 : vector<64x128xf32>
    %26 = vector.extract_strided_slice %6 {offsets = [0, 0, 0, 0], sizes = [1, 8, 8, 4], strides = [1, 1, 1, 1]} : vector<1x10x8x4xf32> to vector<1x8x8x4xf32>
    %27 = vector.shape_cast %26 : vector<1x8x8x4xf32> to vector<64x4xf32>
    %28 = arith.truncf %27 : vector<64x4xf32> to vector<64x4xbf16>
    %c1 = arith.constant 1 : index
    %c0_13 = arith.constant 0 : index
    %c0_14 = arith.constant 0 : index
    %29 = vector.load %arg2[%c1, %c0_13, %c0_14] : memref<9x4x128xbf16, #tpu.memory_space<vmem>>, vector<1x4x128xbf16>
    %30 = vector.shape_cast %29 : vector<1x4x128xbf16> to vector<4x128xbf16>
    %cst_15 = arith.constant dense<0.000000e+00> : vector<64x128xf32>
    %31 = tpu.matmul %28, %30, %cst_15 {dimension_numbers = #tpu.dot_dimension_numbers<[1], [0], [0], [1], [0, 0, 1, 1], [], []>} : vector<64x4xbf16>, vector<4x128xbf16>, vector<64x128xf32> -> vector<64x128xf32>
    %32 = arith.addf %25, %31 : vector<64x128xf32>
    %33 = vector.extract_strided_slice %17 {offsets = [0, 0, 0, 0], sizes = [1, 8, 8, 4], strides = [1, 1, 1, 1]} : vector<1x10x8x4xf32> to vector<1x8x8x4xf32>
    %34 = vector.shape_cast %33 : vector<1x8x8x4xf32> to vector<64x4xf32>
    %35 = arith.truncf %34 : vector<64x4xf32> to vector<64x4xbf16>
    %c2 = arith.constant 2 : index
    %c0_16 = arith.constant 0 : index
    %c0_17 = arith.constant 0 : index
    %36 = vector.load %arg2[%c2, %c0_16, %c0_17] : memref<9x4x128xbf16, #tpu.memory_space<vmem>>, vector<1x4x128xbf16>
    %37 = vector.shape_cast %36 : vector<1x4x128xbf16> to vector<4x128xbf16>
    %cst_18 = arith.constant dense<0.000000e+00> : vector<64x128xf32>
    %38 = tpu.matmul %35, %37, %cst_18 {dimension_numbers = #tpu.dot_dimension_numbers<[1], [0], [0], [1], [0, 0, 1, 1], [], []>} : vector<64x4xbf16>, vector<4x128xbf16>, vector<64x128xf32> -> vector<64x128xf32>
    %39 = arith.addf %32, %38 : vector<64x128xf32>
    %40 = vector.extract_strided_slice %12 {offsets = [0, 1, 0, 0], sizes = [1, 8, 8, 4], strides = [1, 1, 1, 1]} : vector<1x10x8x4xf32> to vector<1x8x8x4xf32>
    %41 = vector.shape_cast %40 : vector<1x8x8x4xf32> to vector<64x4xf32>
    %42 = arith.truncf %41 : vector<64x4xf32> to vector<64x4xbf16>
    %c3 = arith.constant 3 : index
    %c0_19 = arith.constant 0 : index
    %c0_20 = arith.constant 0 : index
    %43 = vector.load %arg2[%c3, %c0_19, %c0_20] : memref<9x4x128xbf16, #tpu.memory_space<vmem>>, vector<1x4x128xbf16>
    %44 = vector.shape_cast %43 : vector<1x4x128xbf16> to vector<4x128xbf16>
    %cst_21 = arith.constant dense<0.000000e+00> : vector<64x128xf32>
    %45 = tpu.matmul %42, %44, %cst_21 {dimension_numbers = #tpu.dot_dimension_numbers<[1], [0], [0], [1], [0, 0, 1, 1], [], []>} : vector<64x4xbf16>, vector<4x128xbf16>, vector<64x128xf32> -> vector<64x128xf32>
    %46 = arith.addf %39, %45 : vector<64x128xf32>
    %47 = vector.extract_strided_slice %6 {offsets = [0, 1, 0, 0], sizes = [1, 8, 8, 4], strides = [1, 1, 1, 1]} : vector<1x10x8x4xf32> to vector<1x8x8x4xf32>
    %48 = vector.shape_cast %47 : vector<1x8x8x4xf32> to vector<64x4xf32>
    %49 = arith.truncf %48 : vector<64x4xf32> to vector<64x4xbf16>
    %c4 = arith.constant 4 : index
    %c0_22 = arith.constant 0 : index
    %c0_23 = arith.constant 0 : index
    %50 = vector.load %arg2[%c4, %c0_22, %c0_23] : memref<9x4x128xbf16, #tpu.memory_space<vmem>>, vector<1x4x128xbf16>
    %51 = vector.shape_cast %50 : vector<1x4x128xbf16> to vector<4x128xbf16>
    %cst_24 = arith.constant dense<0.000000e+00> : vector<64x128xf32>
    %52 = tpu.matmul %49, %51, %cst_24 {dimension_numbers = #tpu.dot_dimension_numbers<[1], [0], [0], [1], [0, 0, 1, 1], [], []>} : vector<64x4xbf16>, vector<4x128xbf16>, vector<64x128xf32> -> vector<64x128xf32>
    %53 = arith.addf %46, %52 : vector<64x128xf32>
    %54 = vector.extract_strided_slice %17 {offsets = [0, 1, 0, 0], sizes = [1, 8, 8, 4], strides = [1, 1, 1, 1]} : vector<1x10x8x4xf32> to vector<1x8x8x4xf32>
    %55 = vector.shape_cast %54 : vector<1x8x8x4xf32> to vector<64x4xf32>
    %56 = arith.truncf %55 : vector<64x4xf32> to vector<64x4xbf16>
    %c5 = arith.constant 5 : index
    %c0_25 = arith.constant 0 : index
    %c0_26 = arith.constant 0 : index
    %57 = vector.load %arg2[%c5, %c0_25, %c0_26] : memref<9x4x128xbf16, #tpu.memory_space<vmem>>, vector<1x4x128xbf16>
    %58 = vector.shape_cast %57 : vector<1x4x128xbf16> to vector<4x128xbf16>
    %cst_27 = arith.constant dense<0.000000e+00> : vector<64x128xf32>
    %59 = tpu.matmul %56, %58, %cst_27 {dimension_numbers = #tpu.dot_dimension_numbers<[1], [0], [0], [1], [0, 0, 1, 1], [], []>} : vector<64x4xbf16>, vector<4x128xbf16>, vector<64x128xf32> -> vector<64x128xf32>
    %60 = arith.addf %53, %59 : vector<64x128xf32>
    %61 = vector.extract_strided_slice %12 {offsets = [0, 2, 0, 0], sizes = [1, 8, 8, 4], strides = [1, 1, 1, 1]} : vector<1x10x8x4xf32> to vector<1x8x8x4xf32>
    %62 = vector.shape_cast %61 : vector<1x8x8x4xf32> to vector<64x4xf32>
    %63 = arith.truncf %62 : vector<64x4xf32> to vector<64x4xbf16>
    %c6 = arith.constant 6 : index
    %c0_28 = arith.constant 0 : index
    %c0_29 = arith.constant 0 : index
    %64 = vector.load %arg2[%c6, %c0_28, %c0_29] : memref<9x4x128xbf16, #tpu.memory_space<vmem>>, vector<1x4x128xbf16>
    %65 = vector.shape_cast %64 : vector<1x4x128xbf16> to vector<4x128xbf16>
    %cst_30 = arith.constant dense<0.000000e+00> : vector<64x128xf32>
    %66 = tpu.matmul %63, %65, %cst_30 {dimension_numbers = #tpu.dot_dimension_numbers<[1], [0], [0], [1], [0, 0, 1, 1], [], []>} : vector<64x4xbf16>, vector<4x128xbf16>, vector<64x128xf32> -> vector<64x128xf32>
    %67 = arith.addf %60, %66 : vector<64x128xf32>
    %68 = vector.extract_strided_slice %6 {offsets = [0, 2, 0, 0], sizes = [1, 8, 8, 4], strides = [1, 1, 1, 1]} : vector<1x10x8x4xf32> to vector<1x8x8x4xf32>
    %69 = vector.shape_cast %68 : vector<1x8x8x4xf32> to vector<64x4xf32>
    %70 = arith.truncf %69 : vector<64x4xf32> to vector<64x4xbf16>
    %c7 = arith.constant 7 : index
    %c0_31 = arith.constant 0 : index
    %c0_32 = arith.constant 0 : index
    %71 = vector.load %arg2[%c7, %c0_31, %c0_32] : memref<9x4x128xbf16, #tpu.memory_space<vmem>>, vector<1x4x128xbf16>
    %72 = vector.shape_cast %71 : vector<1x4x128xbf16> to vector<4x128xbf16>
    %cst_33 = arith.constant dense<0.000000e+00> : vector<64x128xf32>
    %73 = tpu.matmul %70, %72, %cst_33 {dimension_numbers = #tpu.dot_dimension_numbers<[1], [0], [0], [1], [0, 0, 1, 1], [], []>} : vector<64x4xbf16>, vector<4x128xbf16>, vector<64x128xf32> -> vector<64x128xf32>
    %74 = arith.addf %67, %73 : vector<64x128xf32>
    %75 = vector.extract_strided_slice %17 {offsets = [0, 2, 0, 0], sizes = [1, 8, 8, 4], strides = [1, 1, 1, 1]} : vector<1x10x8x4xf32> to vector<1x8x8x4xf32>
    %76 = vector.shape_cast %75 : vector<1x8x8x4xf32> to vector<64x4xf32>
    %77 = arith.truncf %76 : vector<64x4xf32> to vector<64x4xbf16>
    %c8 = arith.constant 8 : index
    %c0_34 = arith.constant 0 : index
    %c0_35 = arith.constant 0 : index
    %78 = vector.load %arg2[%c8, %c0_34, %c0_35] : memref<9x4x128xbf16, #tpu.memory_space<vmem>>, vector<1x4x128xbf16>
    %79 = vector.shape_cast %78 : vector<1x4x128xbf16> to vector<4x128xbf16>
    %cst_36 = arith.constant dense<0.000000e+00> : vector<64x128xf32>
    %80 = tpu.matmul %77, %79, %cst_36 {dimension_numbers = #tpu.dot_dimension_numbers<[1], [0], [0], [1], [0, 0, 1, 1], [], []>} : vector<64x4xbf16>, vector<4x128xbf16>, vector<64x128xf32> -> vector<64x128xf32>
    %81 = arith.addf %74, %80 : vector<64x128xf32>
    %c0_37 = arith.constant 0 : index
    %c0_38 = arith.constant 0 : index
    %82 = vector.load %arg3[%c0_37, %c0_38] : memref<1x128xf32, #tpu.memory_space<vmem>>, vector<1x128xf32>
    %83 = vector.broadcast %82 : vector<1x128xf32> to vector<64x128xf32>
    %84 = arith.addf %81, %83 : vector<64x128xf32>
    %cst_39 = arith.constant 0.000000e+00 : f32
    %85 = vector.broadcast %cst_39 : f32 to vector<64x128xf32>
    %86 = arith.maximumf %84, %85 : vector<64x128xf32>
    %87 = vector.shape_cast %86 : vector<64x128xf32> to vector<1x8x8x128xf32>
    %c0_40 = arith.constant 0 : index
    %c0_41 = arith.constant 0 : index
    %c0_42 = arith.constant 0 : index
    %c0_43 = arith.constant 0 : index
    %88 = vector.load %arg4[%c0_40, %c0_41, %c0_42, %c0_43] : memref<1x8x8x128xf32, #tpu.memory_space<vmem>>, vector<1x8x8x128xf32>
    tpu.vector_store %arg4[%c0_40, %c0_41, %c0_42, %c0_43], %87 {strides = array<i32>} : memref<1x8x8x128xf32, #tpu.memory_space<vmem>>, vector<1x8x8x128xf32>,
    return
  }
  func.func @transform_0(%arg0: i32) -> (i32, i32, i32, i32) {
    %c0_i32 = arith.constant 0 : i32
    %c0_i32_0 = arith.constant 0 : i32
    %c0_i32_1 = arith.constant 0 : i32
    %c0_i32_2 = arith.constant 0 : i32
    return %arg0, %c0_i32, %c0_i32_0, %c0_i32_1 : i32, i32, i32, i32
  }
  func.func @transform_1(%arg0: i32) -> (i32, i32, i32) {
    %c0_i32 = arith.constant 0 : i32
    %c0_i32_0 = arith.constant 0 : i32
    %c0_i32_1 = arith.constant 0 : i32
    %c0_i32_2 = arith.constant 0 : i32
    return %c0_i32, %c0_i32_0, %c0_i32_1 : i32, i32, i32
  }
  func.func @transform_2(%arg0: i32) -> (i32, i32) {
    %c0_i32 = arith.constant 0 : i32
    %c0_i32_0 = arith.constant 0 : i32
    %c0_i32_1 = arith.constant 0 : i32
    return %c0_i32, %c0_i32_0 : i32, i32
  }
  func.func @transform_3(%arg0: i32) -> (i32, i32, i32, i32) {
    %c0_i32 = arith.constant 0 : i32
    %c0_i32_0 = arith.constant 0 : i32
    %c0_i32_1 = arith.constant 0 : i32
    %c0_i32_2 = arith.constant 0 : i32
    return %arg0, %c0_i32, %c0_i32_0, %c0_i32_1 : i32, i32, i32, i32
  }
}

</mosaic_0001>

<llo_original>
// kernel: udown_forward.1
$region0: #{udown_forward.1}
  #allocation0 [shape = 'u32[]', space=smem, size = 0x4, offset = 0x4, fixed_abs, tag = 'smem constant byte address 0x4 - core index']
  #allocation1 [shape = 'u32[144,128]{1,0:T(1,128)}', space=vmem, size = 0x12000, scoped, tag = 'internal scratch']
  %s0 = inlined_call_operand.vmem [shape: f32[2,16,16,4], index: 0, kind: input, shape index: {}]
  %s1 = inlined_call_operand.vmem [shape: bf16[9,4,128], index: 1, kind: input, shape index: {}]
  %s2 = inlined_call_operand.vmem [shape: f32[1,128], index: 2, kind: input, shape index: {}]
  %s3 = inlined_call_operand.vmem [shape: f32[2,8,8,128], index: 3, kind: output, shape index: {}]
  %s4 = sld [smem:[#allocation0]]
  $region45: #{udown_forward.1} parent=0
    _
  %s6 = ssub.s32 1, %s4
  %s7 = scalar_select 0, %s6, %s4
  loop: start=0, step=1, limit=4
  $region2: #{udown_forward.1} parent=0 // loop_pre_header
    _
  $region3: #{udown_forward.1} parent=0 // loop_header
    %s9 = sphi 0, %s13
    %p10 = scmp.ge.s32.totalorder %s9, 4
    %s19 = sphi 0, %s21
    %s22 = sphi 0, %s19
    %s23 = sphi 0, %s22
    %s39 = sphi 0, %s23
    %s43 = sphi 0, %s43
    %s45 = sphi 0, %s43
    %s46 = sphi 0, %s45
    %s60 = sphi 0, %s46
    %s64 = sphi 0, %s64
    %s66 = sphi 0, %s64
    %s67 = sphi 0, %s66
    %s81 = sphi 0, %s67
    %s87 = sphi 0, %s89
    %s90 = sphi 0, %s87
    %s91 = sphi 0, %s90
    %s107 = sphi 0, %s91
  $region4: #{udown_forward.1} parent=0 // loop_header_branch
    %12 = sbr.rel (%p10) target = $region8
  $region5: #{udown_forward.1} parent=0 // loop_body
    %s14 = ssub.s32 %s9, 1
    %s15 = ssub.s32 %s9, 2
    %s16 = sadd.s32 %s9, 1
    %s17 = ssub.s32 %s9, %s16
    %p18 = scmp.eq.s32.totalorder %s17, 0
    %s20 = sadd.s32 %s19, 1
    %s21 = scalar_select %p18, %s19, %s20
    %p24 = pneg %p18
    %p25 = scmp.eq.s32.totalorder %s9, 1
    %p26 = por %p24, %p25
    %p27 = scmp.ne.s32.totalorder %s19, %s22
    %p28 = scmp.eq.s32.totalorder %s9, 0
    %p29 = por %p27, %p28
    %p30 = scmp.ne.s32.totalorder %s19, %s22
    %p31 = scmp.eq.s32.totalorder %s14, 1
    %p32 = por %p30, %p31
    %p33 = scmp.ne.s32.totalorder %s22, %s23
    %p34 = scmp.eq.s32.totalorder %s14, 0
    %p35 = por %p33, %p34
    %p36 = scmp.ne.s32.totalorder %s22, %s23
    %p37 = scmp.eq.s32.totalorder %s15, 1
    %p38 = por %p36, %p37
    %p40 = scmp.ne.s32.totalorder %s23, %s39
    %p41 = scmp.eq.s32.totalorder %s15, 0
    %p42 = por %p40, %p41
    %s44 = sadd.s32 %s43, 1
    %p47 = scmp.eq.s32.totalorder %s9, 1
    %p48 = scmp.ne.s32.totalorder %s43, %s45
    %p49 = scmp.eq.s32.totalorder %s9, 0
    %p50 = por %p48, %p49
    %p51 = scmp.ne.s32.totalorder %s43, %s45
    %p52 = scmp.eq.s32.totalorder %s14, 1
    %p53 = por %p51, %p52
    %p54 = scmp.ne.s32.totalorder %s45, %s46
    %p55 = scmp.eq.s32.totalorder %s14, 0
    %p56 = por %p54, %p55
    %p57 = scmp.ne.s32.totalorder %s45, %s46
    %p58 = scmp.eq.s32.totalorder %s15, 1
    %p59 = por %p57, %p58
    %p61 = scmp.ne.s32.totalorder %s46, %s60
    %p62 = scmp.eq.s32.totalorder %s15, 0
    %p63 = por %p61, %p62
    %s65 = sadd.s32 %s64, 1
    %p68 = scmp.eq.s32.totalorder %s9, 1
    %p69 = scmp.ne.s32.totalorder %s64, %s66
    %p70 = scmp.eq.s32.totalorder %s9, 0
    %p71 = por %p69, %p70
    %p72 = scmp.ne.s32.totalorder %s64, %s66
    %p73 = scmp.eq.s32.totalorder %s14, 1
    %p74 = por %p72, %p73
    %p75 = scmp.ne.s32.totalorder %s66, %s67
    %p76 = scmp.eq.s32.totalorder %s14, 0
    %p77 = por %p75, %p76
    %p78 = scmp.ne.s32.totalorder %s66, %s67
    %p79 = scmp.eq.s32.totalorder %s15, 1
    %p80 = por %p78, %p79
    %p82 = scmp.ne.s32.totalorder %s67, %s81
    %p83 = scmp.eq.s32.totalorder %s15, 0
    %p84 = por %p82, %p83
    %s85 = ssub.s32 %s9, %s16
    %p86 = scmp.eq.s32.totalorder %s85, 0
    %s88 = sadd.s32 %s87, 1
    %s89 = scalar_select %p86, %s87, %s88
    %p92 = pneg %p86
    %p93 = scmp.eq.s32.totalorder %s9, 1
    %p94 = por %p92, %p93
    %p95 = scmp.ne.s32.totalorder %s87, %s90
    %p96 = scmp.eq.s32.totalorder %s9, 0
    %p97 = por %p95, %p96
    %p98 = scmp.ne.s32.totalorder %s87, %s90
    %p99 = scmp.eq.s32.totalorder %s14, 1
    %p100 = por %p98, %p99
    %p101 = scmp.ne.s32.totalorder %s90, %s91
    %p102 = scmp.eq.s32.totalorder %s14, 0
    %p103 = por %p101, %p102
    %p104 = scmp.ne.s32.totalorder %s90, %s91
    %p105 = scmp.eq.s32.totalorder %s15, 1
    %p106 = por %p104, %p105
    %p108 = scmp.ne.s32.totalorder %s91, %s107
    %p109 = scmp.eq.s32.totalorder %s15, 0
    %p110 = por %p108, %p109
    %p111 = scmp.le.s32.totalorder 1, %s9
    %p112 = scmp.lt.s32.totalorder %s9, 3
    %p113 = pnand %p111, %p112
    %p114 = pneg %p113
    // Predicated region
    $region9: #{udown_forward.1} parent=5 // pred_check
      _
    $region10: #{udown_forward.1} parent=5 // pred_check_branch
      %116 = sbr.rel (%p113) target = $region12
    $region11: #{udown_forward.1} parent=5 // pred_region
      %s117 = ssub.s32 %s9, 1
      // Predicated region
      $region13: #{udown_forward.1} parent=11 // pred_check
        %p118 = pneg %p56
      $region14: #{udown_forward.1} parent=11 // pred_check_branch
        %120 = sbr.rel (%p118) target = $region16
      $region15: #{udown_forward.1} parent=11 // pred_region
        _
      $region16: #{udown_forward.1} parent=11 // pred_fallthru
        _
      // Predicated region
      $region17: #{udown_forward.1} parent=11 // pred_check
        %p121 = pneg %p77
      $region18: #{udown_forward.1} parent=11 // pred_check_branch
        %123 = sbr.rel (%p121) target = $region20
      $region19: #{udown_forward.1} parent=11 // pred_region
        _
      $region20: #{udown_forward.1} parent=11 // pred_fallthru
        _
    $region12: #{udown_forward.1} parent=5 // pred_fallthru
      _
    %p124 = scmp.lt.s32.totalorder %s9, 2
    // Predicated region
    $region21: #{udown_forward.1} parent=5 // pred_check
      %p125 = pneg %p124
    $region22: #{udown_forward.1} parent=5 // pred_check_branch
      %127 = sbr.rel (%p125) target = $region24
    $region23: #{udown_forward.1} parent=5 // pred_region
      // Predicated region
      $region25: #{udown_forward.1} parent=23 // pred_check
        %p128 = pneg %p29
      $region26: #{udown_forward.1} parent=23 // pred_check_branch
        %130 = sbr.rel (%p128) target = $region28
      $region27: #{udown_forward.1} parent=23 // pred_region
        %p131 = scmp.lt.s32.totalorder %s9, 1
        %s132 = scalar_select %p131, %s9, 1
        %s133 = smul.addr %s132, 32
        %s134 = smul.addr %s133, 8
        %s135 = scalar_lea.vmem %s0, %s134
      $region28: #{udown_forward.1} parent=23 // pred_fallthru
        _
    $region24: #{udown_forward.1} parent=5 // pred_fallthru
      _
    %p136 = scmp.le.s32.totalorder 1, %s9
    %p137 = scmp.lt.s32.totalorder %s9, 3
    %p138 = pnand %p136, %p137
    %p139 = pneg %p138
    // Predicated region
    $region29: #{udown_forward.1} parent=5 // pred_check
      _
    $region30: #{udown_forward.1} parent=5 // pred_check_branch
      %141 = sbr.rel (%p138) target = $region32
    $region31: #{udown_forward.1} parent=5 // pred_region
      %s142 = ssub.s32 %s9, 1
      %p143 = scmp.lt.s32.totalorder %s14, 1
      %s144 = scalar_select %p143, %s14, 1
      %s145 = smul.addr %s144, 32
      %s146 = smul.addr %s145, 8
      %s147 = scalar_lea.vmem %s0, %s146
      %p148 = pneg %p35
      %p149 = pneg %p32
      %p150 = pneg %p56
      %p151 = pneg %p53
      %p152 = pneg %p77
      %p153 = pneg %p74
      %p154 = pneg %p103
      %p155 = pneg %p100
      %p156 = scmp.lt.s32.totalorder %s14, 1
      %s157 = scalar_select %p156, %s14, 1
      %s158 = smul.addr %s157, 8
      %s159 = smul.addr %s158, 8
      %s160 = scalar_lea.vmem %s3, %s159
      %p161 = scmp.lt.s32.totalorder %s14, 1
      %s162 = scalar_select %p161, %s14, 1
      %s163 = smul.addr %s162, 32
      %s164 = smul.addr %s163, 8
      %s165 = scalar_lea.vmem %s0, %s164
      %p166 = scmp.lt.s32.totalorder %s14, 1
      %s167 = scalar_select %p166, %s14, 1
      %s168 = smul.addr %s167, 8
      %s169 = smul.addr %s168, 8
      %s170 = scalar_lea.vmem %s3, %s169
      %v172 = vld [vmem:[%s165] sm:$0xff]
      %v173 = vld [vmem:[%s165 + $0x8] sm:$0xff]
      %v174 = vld [vmem:[%s165 + $0x10] sm:$0xff]
      %v175 = vld [vmem:[%s165 + $0x18] sm:$0xff]
      %v176 = vld [vmem:[%s165 + $0x20] sm:$0xff]
      %v177 = vld [vmem:[%s165 + $0x28] sm:$0xff]
      %v178 = vld [vmem:[%s165 + $0x30] sm:$0xff]
      %v179 = vld [vmem:[%s165 + $0x38] sm:$0xff]
      %v180 = vld [vmem:[%s165 + $0x40] sm:$0xff]
      %v181 = vld [vmem:[%s165 + $0x48] sm:$0xff]
      %v182 = vld [vmem:[%s165 + $0x50] sm:$0xff]
      %v183 = vld [vmem:[%s165 + $0x58] sm:$0xff]
      %v184 = vld [vmem:[%s165 + $0x60] sm:$0xff]
      %v185 = vld [vmem:[%s165 + $0x68] sm:$0xff]
      %v186 = vld [vmem:[%s165 + $0x70] sm:$0xff]
      %v187 = vld [vmem:[%s165 + $0x78] sm:$0xff]
      %v188 = vld [vmem:[%s165 + $0x80] sm:$0xff]
      %v189 = vld [vmem:[%s165 + $0x88] sm:$0xff]
      %v190 = vld [vmem:[%s165 + $0x90] sm:$0xff]
      %v191 = vld [vmem:[%s165 + $0x98] sm:$0xff]
      %v192 = vld [vmem:[%s165 + $0xa0] sm:$0xff]
      %v193 = vld [vmem:[%s165 + $0xa8] sm:$0xff]
      %v194 = vld [vmem:[%s165 + $0xb0] sm:$0xff]
      %v195 = vld [vmem:[%s165 + $0xb8] sm:$0xff]
      %v196 = vld [vmem:[%s165 + $0xc0] sm:$0xff]
      %v197 = vld [vmem:[%s165 + $0xc8] sm:$0xff]
      %v198 = vld [vmem:[%s165 + $0xd0] sm:$0xff]
      %v199 = vld [vmem:[%s165 + $0xd8] sm:$0xff]
      %v200 = vld [vmem:[%s165 + $0xe0] sm:$0xff]
      %v201 = vld [vmem:[%s165 + $0xe8] sm:$0xff]
      %v202 = vld [vmem:[%s165 + $0xf0] sm:$0xff]
      %v203 = vld [vmem:[%s165 + $0xf8] sm:$0xff]
      %vm204 = vcmask 31744
      %v205 = vsel %vm204, %v172, -inf
      %v206 = vsel %vm204, %v174, -inf
      %v207 = vmax.f32 %v205, %v206
      %v208 = vsel %vm204, %v173, -inf
      %v209 = vsel %vm204, %v175, -inf
      %v210 = vmax.f32 %v208, %v209
      %v211 = vsel %vm204, %v176, -inf
      %v212 = vsel %vm204, %v178, -inf
      %v213 = vmax.f32 %v211, %v212
      %v214 = vsel %vm204, %v177, -inf
      %v215 = vsel %vm204, %v179, -inf
      %v216 = vmax.f32 %v214, %v215
      %v217 = vsel %vm204, %v180, -inf
      %v218 = vsel %vm204, %v182, -inf
      %v219 = vmax.f32 %v217, %v218
      %v220 = vsel %vm204, %v181, -inf
      %v221 = vsel %vm204, %v183, -inf
      %v222 = vmax.f32 %v220, %v221
      %v223 = vsel %vm204, %v184, -inf
      %v224 = vsel %vm204, %v186, -inf
      %v225 = vmax.f32 %v223, %v224
      %v226 = vsel %vm204, %v185, -inf
      %v227 = vsel %vm204, %v187, -inf
      %v228 = vmax.f32 %v226, %v227
      %v229 = vsel %vm204, %v188, -inf
      %v230 = vsel %vm204, %v190, -inf
      %v231 = vmax.f32 %v229, %v230
      %v232 = vsel %vm204, %v189, -inf
      %v233 = vsel %vm204, %v191, -inf
      %v234 = vmax.f32 %v232, %v233
      %v235 = vsel %vm204, %v192, -inf
      %v236 = vsel %vm204, %v194, -inf
      %v237 = vmax.f32 %v235, %v236
      %v238 = vsel %vm204, %v193, -inf
      %v239 = vsel %vm204, %v195, -inf
      %v240 = vmax.f32 %v238, %v239
      %v241 = vsel %vm204, %v196, -inf
      %v242 = vsel %vm204, %v198, -inf
      %v243 = vmax.f32 %v241, %v242
      %v244 = vsel %vm204, %v197, -inf
      %v245 = vsel %vm204, %v199, -inf
      %v246 = vmax.f32 %v244, %v245
      %v247 = vsel %vm204, %v200, -inf
      %v248 = vsel %vm204, %v202, -inf
      %v249 = vmax.f32 %v247, %v248
      %v250 = vsel %vm204, %v201, -inf
      %v251 = vsel %vm204, %v203, -inf
      %v252 = vmax.f32 %v250, %v251
      %v269 = vcombine.high %v207, %v207
      %v271 = vunpack.c.l.s4 1983009808
      %v272 = vunpack.c.0.s8 %v271
      %v273 = vlaneseq
      %v274 = vshrl.u32 %v273, 7
      %v275 = vsub.s32 %v272, %v274
      %v276 = vrot.slane %v207, %v275
      %v278 = vunpack.c.l.s4 1983009808
      %v279 = vunpack.c.0.s8 %v278
      %v280 = vlaneseq
      %v281 = vshrl.u32 %v280, 7
      %v282 = vsub.s32 %v279, %v281
      %v283 = vrot.slane %v269, %v282
      %v284 = vcombine.high %v276, %v276
      %v285 = vcombine.high %v283, %v283
      %v286 = vcombine.high %v210, %v210
      %v288 = vunpack.c.l.s4 1983009808
      %v289 = vunpack.c.0.s8 %v288
      %v290 = vlaneseq
      %v291 = vshrl.u32 %v290, 7
      %v292 = vsub.s32 %v289, %v291
      %v293 = vrot.slane %v210, %v292
      %v295 = vunpack.c.l.s4 1983009808
      %v296 = vunpack.c.0.s8 %v295
      %v297 = vlaneseq
      %v298 = vshrl.u32 %v297, 7
      %v299 = vsub.s32 %v296, %v298
      %v300 = vrot.slane %v286, %v299
      %v301 = vcombine.high %v293, %v293
      %v302 = vcombine.high %v300, %v300
      %v303 = vcombine.high %v213, %v213
      %v305 = vunpack.c.l.s4 1983009808
      %v306 = vunpack.c.0.s8 %v305
      %v307 = vlaneseq
      %v308 = vshrl.u32 %v307, 7
      %v309 = vsub.s32 %v306, %v308
      %v310 = vrot.slane %v213, %v309
      %v312 = vunpack.c.l.s4 1983009808
      %v313 = vunpack.c.0.s8 %v312
      %v314 = vlaneseq
      %v315 = vshrl.u32 %v314, 7
      %v316 = vsub.s32 %v313, %v315
      %v317 = vrot.slane %v303, %v316
      %v318 = vcombine.high %v310, %v310
      %v319 = vcombine.high %v317, %v317
      %v320 = vcombine.high %v216, %v216
      %v322 = vunpack.c.l.s4 1983009808
      %v323 = vunpack.c.0.s8 %v322
      %v324 = vlaneseq
      %v325 = vshrl.u32 %v324, 7
      %v326 = vsub.s32 %v323, %v325
      %v327 = vrot.slane %v216, %v326
      %v329 = vunpack.c.l.s4 1983009808
      %v330 = vunpack.c.0.s8 %v329
      %v331 = vlaneseq
      %v332 = vshrl.u32 %v331, 7
      %v333 = vsub.s32 %v330, %v332
      %v334 = vrot.slane %v320, %v333
      %v335 = vcombine.high %v327, %v327
      %v336 = vcombine.high %v334, %v334
      %v337 = vcombine.high %v219, %v219
      %v339 = vunpack.c.l.s4 1983009808
      %v340 = vunpack.c.0.s8 %v339
      %v341 = vlaneseq
      %v342 = vshrl.u32 %v341, 7
      %v343 = vsub.s32 %v340, %v342
      %v344 = vrot.slane %v219, %v343
      %v346 = vunpack.c.l.s4 1983009808
      %v347 = vunpack.c.0.s8 %v346
      %v348 = vlaneseq
      %v349 = vshrl.u32 %v348, 7
      %v350 = vsub.s32 %v347, %v349
      %v351 = vrot.slane %v337, %v350
      %v352 = vcombine.high %v344, %v344
      %v353 = vcombine.high %v351, %v351
      %v354 = vcombine.high %v222, %v222
      %v356 = vunpack.c.l.s4 1983009808
      %v357 = vunpack.c.0.s8 %v356
      %v358 = vlaneseq
      %v359 = vshrl.u32 %v358, 7
      %v360 = vsub.s32 %v357, %v359
      %v361 = vrot.slane %v222, %v360
      %v363 = vunpack.c.l.s4 1983009808
      %v364 = vunpack.c.0.s8 %v363
      %v365 = vlaneseq
      %v366 = vshrl.u32 %v365, 7
      %v367 = vsub.s32 %v364, %v366
      %v368 = vrot.slane %v354, %v367
      %v369 = vcombine.high %v361, %v361
      %v370 = vcombine.high %v368, %v368
      %v371 = vcombine.high %v225, %v225
      %v373 = vunpack.c.l.s4 1983009808
      %v374 = vunpack.c.0.s8 %v373
      %v375 = vlaneseq
      %v376 = vshrl.u32 %v375, 7
      %v377 = vsub.s32 %v374, %v376
      %v378 = vrot.slane %v225, %v377
      %v380 = vunpack.c.l.s4 1983009808
      %v381 = vunpack.c.0.s8 %v380
      %v382 = vlaneseq
      %v383 = vshrl.u32 %v382, 7
      %v384 = vsub.s32 %v381, %v383
      %v385 = vrot.slane %v371, %v384
      %v386 = vcombine.high %v378, %v378
      %v387 = vcombine.high %v385, %v385
      %v388 = vcombine.high %v228, %v228
      %v390 = vunpack.c.l.s4 1983009808
      %v391 = vunpack.c.0.s8 %v390
      %v392 = vlaneseq
      %v393 = vshrl.u32 %v392, 7
      %v394 = vsub.s32 %v391, %v393
      %v395 = vrot.slane %v228, %v394
      %v397 = vunpack.c.l.s4 1983009808
      %v398 = vunpack.c.0.s8 %v397
      %v399 = vlaneseq
      %v400 = vshrl.u32 %v399, 7
      %v401 = vsub.s32 %v398, %v400
      %v402 = vrot.slane %v388, %v401
      %v403 = vcombine.high %v395, %v395
      %v404 = vcombine.high %v402, %v402
      %v405 = vcombine.high %v231, %v231
      %v407 = vunpack.c.l.s4 1983009808
      %v408 = vunpack.c.0.s8 %v407
      %v409 = vlaneseq
      %v410 = vshrl.u32 %v409, 7
      %v411 = vsub.s32 %v408, %v410
      %v412 = vrot.slane %v231, %v411
      %v414 = vunpack.c.l.s4 1983009808
      %v415 = vunpack.c.0.s8 %v414
      %v416 = vlaneseq
      %v417 = vshrl.u32 %v416, 7
      %v418 = vsub.s32 %v415, %v417
      %v419 = vrot.slane %v405, %v418
      %v420 = vcombine.high %v412, %v412
      %v421 = vcombine.high %v419, %v419
      %v422 = vcombine.high %v234, %v234
      %v424 = vunpack.c.l.s4 1983009808
      %v425 = vunpack.c.0.s8 %v424
      %v426 = vlaneseq
      %v427 = vshrl.u32 %v426, 7
      %v428 = vsub.s32 %v425, %v427
      %v429 = vrot.slane %v234, %v428
      %v431 = vunpack.c.l.s4 1983009808
      %v432 = vunpack.c.0.s8 %v431
      %v433 = vlaneseq
      %v434 = vshrl.u32 %v433, 7
      %v435 = vsub.s32 %v432, %v434
      %v436 = vrot.slane %v422, %v435
      %v437 = vcombine.high %v429, %v429
      %v438 = vcombine.high %v436, %v436
      %v439 = vcombine.high %v237, %v237
      %v441 = vunpack.c.l.s4 1983009808
      %v442 = vunpack.c.0.s8 %v441
      %v443 = vlaneseq
      %v444 = vshrl.u32 %v443, 7
      %v445 = vsub.s32 %v442, %v444
      %v446 = vrot.slane %v237, %v445
      %v448 = vunpack.c.l.s4 1983009808
      %v449 = vunpack.c.0.s8 %v448
      %v450 = vlaneseq
      %v451 = vshrl.u32 %v450, 7
      %v452 = vsub.s32 %v449, %v451
      %v453 = vrot.slane %v439, %v452
      %v454 = vcombine.high %v446, %v446
      %v455 = vcombine.high %v453, %v453
      %v456 = vcombine.high %v240, %v240
      %v458 = vunpack.c.l.s4 1983009808
      %v459 = vunpack.c.0.s8 %v458
      %v460 = vlaneseq
      %v461 = vshrl.u32 %v460, 7
      %v462 = vsub.s32 %v459, %v461
      %v463 = vrot.slane %v240, %v462
      %v465 = vunpack.c.l.s4 1983009808
      %v466 = vunpack.c.0.s8 %v465
      %v467 = vlaneseq
      %v468 = vshrl.u32 %v467, 7
      %v469 = vsub.s32 %v466, %v468
      %v470 = vrot.slane %v456, %v469
      %v471 = vcombine.high %v463, %v463
      %v472 = vcombine.high %v470, %v470
      %v473 = vcombine.high %v243, %v243
      %v475 = vunpack.c.l.s4 1983009808
      %v476 = vunpack.c.0.s8 %v475
      %v477 = vlaneseq
      %v478 = vshrl.u32 %v477, 7
      %v479 = vsub.s32 %v476, %v478
      %v480 = vrot.slane %v243, %v479
      %v482 = vunpack.c.l.s4 1983009808
      %v483 = vunpack.c.0.s8 %v482
      %v484 = vlaneseq
      %v485 = vshrl.u32 %v484, 7
      %v486 = vsub.s32 %v483, %v485
      %v487 = vrot.slane %v473, %v486
      %v488 = vcombine.high %v480, %v480
      %v489 = vcombine.high %v487, %v487
      %v490 = vcombine.high %v246, %v246
      %v492 = vunpack.c.l.s4 1983009808
      %v493 = vunpack.c.0.s8 %v492
      %v494 = vlaneseq
      %v495 = vshrl.u32 %v494, 7
      %v496 = vsub.s32 %v493, %v495
      %v497 = vrot.slane %v246, %v496
      %v499 = vunpack.c.l.s4 1983009808
      %v500 = vunpack.c.0.s8 %v499
      %v501 = vlaneseq
      %v502 = vshrl.u32 %v501, 7
      %v503 = vsub.s32 %v500, %v502
      %v504 = vrot.slane %v490, %v503
      %v505 = vcombine.high %v497, %v497
      %v506 = vcombine.high %v504, %v504
      %v507 = vcombine.high %v249, %v249
      %v509 = vunpack.c.l.s4 1983009808
      %v510 = vunpack.c.0.s8 %v509
      %v511 = vlaneseq
      %v512 = vshrl.u32 %v511, 7
      %v513 = vsub.s32 %v510, %v512
      %v514 = vrot.slane %v249, %v513
      %v516 = vunpack.c.l.s4 1983009808
      %v517 = vunpack.c.0.s8 %v516
      %v518 = vlaneseq
      %v519 = vshrl.u32 %v518, 7
      %v520 = vsub.s32 %v517, %v519
      %v521 = vrot.slane %v507, %v520
      %v522 = vcombine.high %v514, %v514
      %v523 = vcombine.high %v521, %v521
      %v524 = vcombine.high %v252, %v252
      %v526 = vunpack.c.l.s4 1983009808
      %v527 = vunpack.c.0.s8 %v526
      %v528 = vlaneseq
      %v529 = vshrl.u32 %v528, 7
      %v530 = vsub.s32 %v527, %v529
      %v531 = vrot.slane %v252, %v530
      %v533 = vunpack.c.l.s4 1983009808
      %v534 = vunpack.c.0.s8 %v533
      %v535 = vlaneseq
      %v536 = vshrl.u32 %v535, 7
      %v537 = vsub.s32 %v534, %v536
      %v538 = vrot.slane %v524, %v537
      %v539 = vcombine.high %v531, %v531
      %v540 = vcombine.high %v538, %v538
      %vm605 = vcmask 25600
      %v606 = vsel %vm605, %v276, -inf
      %v607 = vrot.slane %v606, 4
      %v608 = vmax.f32 %v606, %v607
      %v609 = vrot.slane %v608, 2
      %v610 = vmax.f32 %v608, %v609
      %v611 = vrot.slane %v610, 1
      %v612 = vmax.f32 %v610, %v611
      %v613 = vsel %vm605, %v284, -inf
      %v614 = vrot.slane %v613, 4
      %v615 = vmax.f32 %v613, %v614
      %v616 = vrot.slane %v615, 2
      %v617 = vmax.f32 %v615, %v616
      %v618 = vrot.slane %v617, 1
      %v619 = vmax.f32 %v617, %v618
      %v620 = vsel %vm605, %v283, -inf
      %v621 = vrot.slane %v620, 4
      %v622 = vmax.f32 %v620, %v621
      %v623 = vrot.slane %v622, 2
      %v624 = vmax.f32 %v622, %v623
      %v625 = vrot.slane %v624, 1
      %v626 = vmax.f32 %v624, %v625
      %v627 = vsel %vm605, %v285, -inf
      %v628 = vrot.slane %v627, 4
      %v629 = vmax.f32 %v627, %v628
      %v630 = vrot.slane %v629, 2
      %v631 = vmax.f32 %v629, %v630
      %v632 = vrot.slane %v631, 1
      %v633 = vmax.f32 %v631, %v632
      %v634 = vsel %vm605, %v293, -inf
      %v635 = vrot.slane %v634, 4
      %v636 = vmax.f32 %v634, %v635
      %v637 = vrot.slane %v636, 2
      %v638 = vmax.f32 %v636, %v637
      %v639 = vrot.slane %v638, 1
      %v640 = vmax.f32 %v638, %v639
      %v641 = vsel %vm605, %v301, -inf
      %v642 = vrot.slane %v641, 4
      %v643 = vmax.f32 %v641, %v642
      %v644 = vrot.slane %v643, 2
      %v645 = vmax.f32 %v643, %v644
      %v646 = vrot.slane %v645, 1
      %v647 = vmax.f32 %v645, %v646
      %v648 = vsel %vm605, %v300, -inf
      %v649 = vrot.slane %v648, 4
      %v650 = vmax.f32 %v648, %v649
      %v651 = vrot.slane %v650, 2
      %v652 = vmax.f32 %v650, %v651
      %v653 = vrot.slane %v652, 1
      %v654 = vmax.f32 %v652, %v653
      %v655 = vsel %vm605, %v302, -inf
      %v656 = vrot.slane %v655, 4
      %v657 = vmax.f32 %v655, %v656
      %v658 = vrot.slane %v657, 2
      %v659 = vmax.f32 %v657, %v658
      %v660 = vrot.slane %v659, 1
      %v661 = vmax.f32 %v659, %v660
      %v662 = vsel %vm605, %v310, -inf
      %v663 = vrot.slane %v662, 4
      %v664 = vmax.f32 %v662, %v663
      %v665 = vrot.slane %v664, 2
      %v666 = vmax.f32 %v664, %v665
      %v667 = vrot.slane %v666, 1
      %v668 = vmax.f32 %v666, %v667
      %v669 = vsel %vm605, %v318, -inf
      %v670 = vrot.slane %v669, 4
      %v671 = vmax.f32 %v669, %v670
      %v672 = vrot.slane %v671, 2
      %v673 = vmax.f32 %v671, %v672
      %v674 = vrot.slane %v673, 1
      %v675 = vmax.f32 %v673, %v674
      %v676 = vsel %vm605, %v317, -inf
      %v677 = vrot.slane %v676, 4
      %v678 = vmax.f32 %v676, %v677
      %v679 = vrot.slane %v678, 2
      %v680 = vmax.f32 %v678, %v679
      %v681 = vrot.slane %v680, 1
      %v682 = vmax.f32 %v680, %v681
      %v683 = vsel %vm605, %v319, -inf
      %v684 = vrot.slane %v683, 4
      %v685 = vmax.f32 %v683, %v684
      %v686 = vrot.slane %v685, 2
      %v687 = vmax.f32 %v685, %v686
      %v688 = vrot.slane %v687, 1
      %v689 = vmax.f32 %v687, %v688
      %v690 = vsel %vm605, %v327, -inf
      %v691 = vrot.slane %v690, 4
      %v692 = vmax.f32 %v690, %v691
      %v693 = vrot.slane %v692, 2
      %v694 = vmax.f32 %v692, %v693
      %v695 = vrot.slane %v694, 1
      %v696 = vmax.f32 %v694, %v695
      %v697 = vsel %vm605, %v335, -inf
      %v698 = vrot.slane %v697, 4
      %v699 = vmax.f32 %v697, %v698
      %v700 = vrot.slane %v699, 2
      %v701 = vmax.f32 %v699, %v700
      %v702 = vrot.slane %v701, 1
      %v703 = vmax.f32 %v701, %v702
      %v704 = vsel %vm605, %v334, -inf
      %v705 = vrot.slane %v704, 4
      %v706 = vmax.f32 %v704, %v705
      %v707 = vrot.slane %v706, 2
      %v708 = vmax.f32 %v706, %v707
      %v709 = vrot.slane %v708, 1
      %v710 = vmax.f32 %v708, %v709
      %v711 = vsel %vm605, %v336, -inf
      %v712 = vrot.slane %v711, 4
      %v713 = vmax.f32 %v711, %v712
      %v714 = vrot.slane %v713, 2
      %v715 = vmax.f32 %v713, %v714
      %v716 = vrot.slane %v715, 1
      %v717 = vmax.f32 %v715, %v716
      %v718 = vsel %vm605, %v344, -inf
      %v719 = vrot.slane %v718, 4
      %v720 = vmax.f32 %v718, %v719
      %v721 = vrot.slane %v720, 2
      %v722 = vmax.f32 %v720, %v721
      %v723 = vrot.slane %v722, 1
      %v724 = vmax.f32 %v722, %v723
      %v725 = vsel %vm605, %v352, -inf
      %v726 = vrot.slane %v725, 4
      %v727 = vmax.f32 %v725, %v726
      %v728 = vrot.slane %v727, 2
      %v729 = vmax.f32 %v727, %v728
      %v730 = vrot.slane %v729, 1
      %v731 = vmax.f32 %v729, %v730
      %v732 = vsel %vm605, %v351, -inf
      %v733 = vrot.slane %v732, 4
      %v734 = vmax.f32 %v732, %v733
      %v735 = vrot.slane %v734, 2
      %v736 = vmax.f32 %v734, %v735
      %v737 = vrot.slane %v736, 1
      %v738 = vmax.f32 %v736, %v737
      %v739 = vsel %vm605, %v353, -inf
      %v740 = vrot.slane %v739, 4
      %v741 = vmax.f32 %v739, %v740
      %v742 = vrot.slane %v741, 2
      %v743 = vmax.f32 %v741, %v742
      %v744 = vrot.slane %v743, 1
      %v745 = vmax.f32 %v743, %v744
      %v746 = vsel %vm605, %v361, -inf
      %v747 = vrot.slane %v746, 4
      %v748 = vmax.f32 %v746, %v747
      %v749 = vrot.slane %v748, 2
      %v750 = vmax.f32 %v748, %v749
      %v751 = vrot.slane %v750, 1
      %v752 = vmax.f32 %v750, %v751
      %v753 = vsel %vm605, %v369, -inf
      %v754 = vrot.slane %v753, 4
      %v755 = vmax.f32 %v753, %v754
      %v756 = vrot.slane %v755, 2
      %v757 = vmax.f32 %v755, %v756
      %v758 = vrot.slane %v757, 1
      %v759 = vmax.f32 %v757, %v758
      %v760 = vsel %vm605, %v368, -inf
      %v761 = vrot.slane %v760, 4
      %v762 = vmax.f32 %v760, %v761
      %v763 = vrot.slane %v762, 2
      %v764 = vmax.f32 %v762, %v763
      %v765 = vrot.slane %v764, 1
      %v766 = vmax.f32 %v764, %v765
      %v767 = vsel %vm605, %v370, -inf
      %v768 = vrot.slane %v767, 4
      %v769 = vmax.f32 %v767, %v768
      %v770 = vrot.slane %v769, 2
      %v771 = vmax.f32 %v769, %v770
      %v772 = vrot.slane %v771, 1
      %v773 = vmax.f32 %v771, %v772
      %v774 = vsel %vm605, %v378, -inf
      %v775 = vrot.slane %v774, 4
      %v776 = vmax.f32 %v774, %v775
      %v777 = vrot.slane %v776, 2
      %v778 = vmax.f32 %v776, %v777
      %v779 = vrot.slane %v778, 1
      %v780 = vmax.f32 %v778, %v779
      %v781 = vsel %vm605, %v386, -inf
      %v782 = vrot.slane %v781, 4
      %v783 = vmax.f32 %v781, %v782
      %v784 = vrot.slane %v783, 2
      %v785 = vmax.f32 %v783, %v784
      %v786 = vrot.slane %v785, 1
      %v787 = vmax.f32 %v785, %v786
      %v788 = vsel %vm605, %v385, -inf
      %v789 = vrot.slane %v788, 4
      %v790 = vmax.f32 %v788, %v789
      %v791 = vrot.slane %v790, 2
      %v792 = vmax.f32 %v790, %v791
      %v793 = vrot.slane %v792, 1
      %v794 = vmax.f32 %v792, %v793
      %v795 = vsel %vm605, %v387, -inf
      %v796 = vrot.slane %v795, 4
      %v797 = vmax.f32 %v795, %v796
      %v798 = vrot.slane %v797, 2
      %v799 = vmax.f32 %v797, %v798
      %v800 = vrot.slane %v799, 1
      %v801 = vmax.f32 %v799, %v800
      %v802 = vsel %vm605, %v395, -inf
      %v803 = vrot.slane %v802, 4
      %v804 = vmax.f32 %v802, %v803
      %v805 = vrot.slane %v804, 2
      %v806 = vmax.f32 %v804, %v805
      %v807 = vrot.slane %v806, 1
      %v808 = vmax.f32 %v806, %v807
      %v809 = vsel %vm605, %v403, -inf
      %v810 = vrot.slane %v809, 4
      %v811 = vmax.f32 %v809, %v810
      %v812 = vrot.slane %v811, 2
      %v813 = vmax.f32 %v811, %v812
      %v814 = vrot.slane %v813, 1
      %v815 = vmax.f32 %v813, %v814
      %v816 = vsel %vm605, %v402, -inf
      %v817 = vrot.slane %v816, 4
      %v818 = vmax.f32 %v816, %v817
      %v819 = vrot.slane %v818, 2
      %v820 = vmax.f32 %v818, %v819
      %v821 = vrot.slane %v820, 1
      %v822 = vmax.f32 %v820, %v821
      %v823 = vsel %vm605, %v404, -inf
      %v824 = vrot.slane %v823, 4
      %v825 = vmax.f32 %v823, %v824
      %v826 = vrot.slane %v825, 2
      %v827 = vmax.f32 %v825, %v826
      %v828 = vrot.slane %v827, 1
      %v829 = vmax.f32 %v827, %v828
      %v830 = vsel %vm605, %v412, -inf
      %v831 = vrot.slane %v830, 4
      %v832 = vmax.f32 %v830, %v831
      %v833 = vrot.slane %v832, 2
      %v834 = vmax.f32 %v832, %v833
      %v835 = vrot.slane %v834, 1
      %v836 = vmax.f32 %v834, %v835
      %v837 = vsel %vm605, %v420, -inf
      %v838 = vrot.slane %v837, 4
      %v839 = vmax.f32 %v837, %v838
      %v840 = vrot.slane %v839, 2
      %v841 = vmax.f32 %v839, %v840
      %v842 = vrot.slane %v841, 1
      %v843 = vmax.f32 %v841, %v842
      %v844 = vsel %vm605, %v419, -inf
      %v845 = vrot.slane %v844, 4
      %v846 = vmax.f32 %v844, %v845
      %v847 = vrot.slane %v846, 2
      %v848 = vmax.f32 %v846, %v847
      %v849 = vrot.slane %v848, 1
      %v850 = vmax.f32 %v848, %v849
      %v851 = vsel %vm605, %v421, -inf
      %v852 = vrot.slane %v851, 4
      %v853 = vmax.f32 %v851, %v852
      %v854 = vrot.slane %v853, 2
      %v855 = vmax.f32 %v853, %v854
      %v856 = vrot.slane %v855, 1
      %v857 = vmax.f32 %v855, %v856
      %v858 = vsel %vm605, %v429, -inf
      %v859 = vrot.slane %v858, 4
      %v860 = vmax.f32 %v858, %v859
      %v861 = vrot.slane %v860, 2
      %v862 = vmax.f32 %v860, %v861
      %v863 = vrot.slane %v862, 1
      %v864 = vmax.f32 %v862, %v863
      %v865 = vsel %vm605, %v437, -inf
      %v866 = vrot.slane %v865, 4
      %v867 = vmax.f32 %v865, %v866
      %v868 = vrot.slane %v867, 2
      %v869 = vmax.f32 %v867, %v868
      %v870 = vrot.slane %v869, 1
      %v871 = vmax.f32 %v869, %v870
      %v872 = vsel %vm605, %v436, -inf
      %v873 = vrot.slane %v872, 4
      %v874 = vmax.f32 %v872, %v873
      %v875 = vrot.slane %v874, 2
      %v876 = vmax.f32 %v874, %v875
      %v877 = vrot.slane %v876, 1
      %v878 = vmax.f32 %v876, %v877
      %v879 = vsel %vm605, %v438, -inf
      %v880 = vrot.slane %v879, 4
      %v881 = vmax.f32 %v879, %v880
      %v882 = vrot.slane %v881, 2
      %v883 = vmax.f32 %v881, %v882
      %v884 = vrot.slane %v883, 1
      %v885 = vmax.f32 %v883, %v884
      %v886 = vsel %vm605, %v446, -inf
      %v887 = vrot.slane %v886, 4
      %v888 = vmax.f32 %v886, %v887
      %v889 = vrot.slane %v888, 2
      %v890 = vmax.f32 %v888, %v889
      %v891 = vrot.slane %v890, 1
      %v892 = vmax.f32 %v890, %v891
      %v893 = vsel %vm605, %v454, -inf
      %v894 = vrot.slane %v893, 4
      %v895 = vmax.f32 %v893, %v894
      %v896 = vrot.slane %v895, 2
      %v897 = vmax.f32 %v895, %v896
      %v898 = vrot.slane %v897, 1
      %v899 = vmax.f32 %v897, %v898
      %v900 = vsel %vm605, %v453, -inf
      %v901 = vrot.slane %v900, 4
      %v902 = vmax.f32 %v900, %v901
      %v903 = vrot.slane %v902, 2
      %v904 = vmax.f32 %v902, %v903
      %v905 = vrot.slane %v904, 1
      %v906 = vmax.f32 %v904, %v905
      %v907 = vsel %vm605, %v455, -inf
      %v908 = vrot.slane %v907, 4
      %v909 = vmax.f32 %v907, %v908
      %v910 = vrot.slane %v909, 2
      %v911 = vmax.f32 %v909, %v910
      %v912 = vrot.slane %v911, 1
      %v913 = vmax.f32 %v911, %v912
      %v914 = vsel %vm605, %v463, -inf
      %v915 = vrot.slane %v914, 4
      %v916 = vmax.f32 %v914, %v915
      %v917 = vrot.slane %v916, 2
      %v918 = vmax.f32 %v916, %v917
      %v919 = vrot.slane %v918, 1
      %v920 = vmax.f32 %v918, %v919
      %v921 = vsel %vm605, %v471, -inf
      %v922 = vrot.slane %v921, 4
      %v923 = vmax.f32 %v921, %v922
      %v924 = vrot.slane %v923, 2
      %v925 = vmax.f32 %v923, %v924
      %v926 = vrot.slane %v925, 1
      %v927 = vmax.f32 %v925, %v926
      %v928 = vsel %vm605, %v470, -inf
      %v929 = vrot.slane %v928, 4
      %v930 = vmax.f32 %v928, %v929
      %v931 = vrot.slane %v930, 2
      %v932 = vmax.f32 %v930, %v931
      %v933 = vrot.slane %v932, 1
      %v934 = vmax.f32 %v932, %v933
      %v935 = vsel %vm605, %v472, -inf
      %v936 = vrot.slane %v935, 4
      %v937 = vmax.f32 %v935, %v936
      %v938 = vrot.slane %v937, 2
      %v939 = vmax.f32 %v937, %v938
      %v940 = vrot.slane %v939, 1
      %v941 = vmax.f32 %v939, %v940
      %v942 = vsel %vm605, %v480, -inf
      %v943 = vrot.slane %v942, 4
      %v944 = vmax.f32 %v942, %v943
      %v945 = vrot.slane %v944, 2
      %v946 = vmax.f32 %v944, %v945
      %v947 = vrot.slane %v946, 1
      %v948 = vmax.f32 %v946, %v947
      %v949 = vsel %vm605, %v488, -inf
      %v950 = vrot.slane %v949, 4
      %v951 = vmax.f32 %v949, %v950
      %v952 = vrot.slane %v951, 2
      %v953 = vmax.f32 %v951, %v952
      %v954 = vrot.slane %v953, 1
      %v955 = vmax.f32 %v953, %v954
      %v956 = vsel %vm605, %v487, -inf
      %v957 = vrot.slane %v956, 4
      %v958 = vmax.f32 %v956, %v957
      %v959 = vrot.slane %v958, 2
      %v960 = vmax.f32 %v958, %v959
      %v961 = vrot.slane %v960, 1
      %v962 = vmax.f32 %v960, %v961
      %v963 = vsel %vm605, %v489, -inf
      %v964 = vrot.slane %v963, 4
      %v965 = vmax.f32 %v963, %v964
      %v966 = vrot.slane %v965, 2
      %v967 = vmax.f32 %v965, %v966
      %v968 = vrot.slane %v967, 1
      %v969 = vmax.f32 %v967, %v968
      %v970 = vsel %vm605, %v497, -inf
      %v971 = vrot.slane %v970, 4
      %v972 = vmax.f32 %v970, %v971
      %v973 = vrot.slane %v972, 2
      %v974 = vmax.f32 %v972, %v973
      %v975 = vrot.slane %v974, 1
      %v976 = vmax.f32 %v974, %v975
      %v977 = vsel %vm605, %v505, -inf
      %v978 = vrot.slane %v977, 4
      %v979 = vmax.f32 %v977, %v978
      %v980 = vrot.slane %v979, 2
      %v981 = vmax.f32 %v979, %v980
      %v982 = vrot.slane %v981, 1
      %v983 = vmax.f32 %v981, %v982
      %v984 = vsel %vm605, %v504, -inf
      %v985 = vrot.slane %v984, 4
      %v986 = vmax.f32 %v984, %v985
      %v987 = vrot.slane %v986, 2
      %v988 = vmax.f32 %v986, %v987
      %v989 = vrot.slane %v988, 1
      %v990 = vmax.f32 %v988, %v989
      %v991 = vsel %vm605, %v506, -inf
      %v992 = vrot.slane %v991, 4
      %v993 = vmax.f32 %v991, %v992
      %v994 = vrot.slane %v993, 2
      %v995 = vmax.f32 %v993, %v994
      %v996 = vrot.slane %v995, 1
      %v997 = vmax.f32 %v995, %v996
      %v998 = vsel %vm605, %v514, -inf
      %v999 = vrot.slane %v998, 4
      %v1000 = vmax.f32 %v998, %v999
      %v1001 = vrot.slane %v1000, 2
      %v1002 = vmax.f32 %v1000, %v1001
      %v1003 = vrot.slane %v1002, 1
      %v1004 = vmax.f32 %v1002, %v1003
      %v1005 = vsel %vm605, %v522, -inf
      %v1006 = vrot.slane %v1005, 4
      %v1007 = vmax.f32 %v1005, %v1006
      %v1008 = vrot.slane %v1007, 2
      %v1009 = vmax.f32 %v1007, %v1008
      %v1010 = vrot.slane %v1009, 1
      %v1011 = vmax.f32 %v1009, %v1010
      %v1012 = vsel %vm605, %v521, -inf
      %v1013 = vrot.slane %v1012, 4
      %v1014 = vmax.f32 %v1012, %v1013
      %v1015 = vrot.slane %v1014, 2
      %v1016 = vmax.f32 %v1014, %v1015
      %v1017 = vrot.slane %v1016, 1
      %v1018 = vmax.f32 %v1016, %v1017
      %v1019 = vsel %vm605, %v523, -inf
      %v1020 = vrot.slane %v1019, 4
      %v1021 = vmax.f32 %v1019, %v1020
      %v1022 = vrot.slane %v1021, 2
      %v1023 = vmax.f32 %v1021, %v1022
      %v1024 = vrot.slane %v1023, 1
      %v1025 = vmax.f32 %v1023, %v1024
      %v1026 = vsel %vm605, %v531, -inf
      %v1027 = vrot.slane %v1026, 4
      %v1028 = vmax.f32 %v1026, %v1027
      %v1029 = vrot.slane %v1028, 2
      %v1030 = vmax.f32 %v1028, %v1029
      %v1031 = vrot.slane %v1030, 1
      %v1032 = vmax.f32 %v1030, %v1031
      %v1033 = vsel %vm605, %v539, -inf
      %v1034 = vrot.slane %v1033, 4
      %v1035 = vmax.f32 %v1033, %v1034
      %v1036 = vrot.slane %v1035, 2
      %v1037 = vmax.f32 %v1035, %v1036
      %v1038 = vrot.slane %v1037, 1
      %v1039 = vmax.f32 %v1037, %v1038
      %v1040 = vsel %vm605, %v538, -inf
      %v1041 = vrot.slane %v1040, 4
      %v1042 = vmax.f32 %v1040, %v1041
      %v1043 = vrot.slane %v1042, 2
      %v1044 = vmax.f32 %v1042, %v1043
      %v1045 = vrot.slane %v1044, 1
      %v1046 = vmax.f32 %v1044, %v1045
      %v1047 = vsel %vm605, %v540, -inf
      %v1048 = vrot.slane %v1047, 4
      %v1049 = vmax.f32 %v1047, %v1048
      %v1050 = vrot.slane %v1049, 2
      %v1051 = vmax.f32 %v1049, %v1050
      %v1052 = vrot.slane %v1051, 1
      %v1053 = vmax.f32 %v1051, %v1052
      %vm1118 = vcmask 1041409
      %v1119 = vsel %vm1118, %v619, %v612
      %vm1120 = vcmask 1042434
      %v1121 = vsel %vm1120, %v626, %v1119
      %vm1122 = vcmask 1043459
      %v1123 = vsel %vm1122, %v633, %v1121
      %vm1124 = vcmask 1044484
      %v1125 = vsel %vm1124, %v640, %v1123
      %vm1126 = vcmask 1045509
      %v1127 = vsel %vm1126, %v647, %v1125
      %vm1128 = vcmask 1046534
      %v1129 = vsel %vm1128, %v654, %v1127
      %vm1130 = vcmask 1047559
      %v1131 = vsel %vm1130, %v661, %v1129
      %v1132 = vsel %vm1118, %v675, %v668
      %v1133 = vsel %vm1120, %v682, %v1132
      %v1134 = vsel %vm1122, %v689, %v1133
      %v1135 = vsel %vm1124, %v696, %v1134
      %v1136 = vsel %vm1126, %v703, %v1135
      %v1137 = vsel %vm1128, %v710, %v1136
      %v1138 = vsel %vm1130, %v717, %v1137
      %v1139 = vsel %vm1118, %v731, %v724
      %v1140 = vsel %vm1120, %v738, %v1139
      %v1141 = vsel %vm1122, %v745, %v1140
      %v1142 = vsel %vm1124, %v752, %v1141
      %v1143 = vsel %vm1126, %v759, %v1142
      %v1144 = vsel %vm1128, %v766, %v1143
      %v1145 = vsel %vm1130, %v773, %v1144
      %v1146 = vsel %vm1118, %v787, %v780
      %v1147 = vsel %vm1120, %v794, %v1146
      %v1148 = vsel %vm1122, %v801, %v1147
      %v1149 = vsel %vm1124, %v808, %v1148
      %v1150 = vsel %vm1126, %v815, %v1149
      %v1151 = vsel %vm1128, %v822, %v1150
      %v1152 = vsel %vm1130, %v829, %v1151
      %v1153 = vsel %vm1118, %v843, %v836
      %v1154 = vsel %vm1120, %v850, %v1153
      %v1155 = vsel %vm1122, %v857, %v1154
      %v1156 = vsel %vm1124, %v864, %v1155
      %v1157 = vsel %vm1126, %v871, %v1156
      %v1158 = vsel %vm1128, %v878, %v1157
      %v1159 = vsel %vm1130, %v885, %v1158
      %v1160 = vsel %vm1118, %v899, %v892
      %v1161 = vsel %vm1120, %v906, %v1160
      %v1162 = vsel %vm1122, %v913, %v1161
      %v1163 = vsel %vm1124, %v920, %v1162
      %v1164 = vsel %vm1126, %v927, %v1163
      %v1165 = vsel %vm1128, %v934, %v1164
      %v1166 = vsel %vm1130, %v941, %v1165
      %v1167 = vsel %vm1118, %v955, %v948
      %v1168 = vsel %vm1120, %v962, %v1167
      %v1169 = vsel %vm1122, %v969, %v1168
      %v1170 = vsel %vm1124, %v976, %v1169
      %v1171 = vsel %vm1126, %v983, %v1170
      %v1172 = vsel %vm1128, %v990, %v1171
      %v1173 = vsel %vm1130, %v997, %v1172
      %v1174 = vsel %vm1118, %v1011, %v1004
      %v1175 = vsel %vm1120, %v1018, %v1174
      %v1176 = vsel %vm1122, %v1025, %v1175
      %v1177 = vsel %vm1124, %v1032, %v1176
      %v1178 = vsel %vm1126, %v1039, %v1177
      %v1179 = vsel %vm1128, %v1046, %v1178
      %v1180 = vsel %vm1130, %v1053, %v1179
      %v1189 = vlaneseq
      %v1190 = vshrl.u32 %v1189, 7
      %vm1191 = vcmp.ge.s32.totalorder %v1190, 1
      %v1192 = vrot.slane %v1131, 7
      %v1193 = vrot.slane %v1138, 7
      %v1194 = vrot.slane %v1145, 7
      %v1195 = vrot.slane %v1152, 7
      %v1196 = vrot.slane %v1159, 7
      %v1197 = vrot.slane %v1166, 7
      %v1198 = vrot.slane %v1173, 7
      %v1199 = vrot.slane %v1180, 7
      %v1200 = vsel %vm1191, 0.0, 0.0
      %v1201 = vsel %vm1191, %v1192, 0.0
      %v1202 = vsel %vm1191, %v1193, 0.0
      %v1203 = vsel %vm1191, %v1194, 0.0
      %v1204 = vsel %vm1191, %v1195, 0.0
      %v1205 = vsel %vm1191, %v1196, 0.0
      %v1206 = vsel %vm1191, %v1197, 0.0
      %v1207 = vsel %vm1191, %v1198, 0.0
      %v1208 = vsel %vm1191, %v1199, 0.0
      %vm1209 = vcmp.le.s32.totalorder %v1190, 6
      %v1210 = vrot.slane %v1131, 1
      %v1211 = vrot.slane %v1138, 1
      %v1212 = vrot.slane %v1145, 1
      %v1213 = vrot.slane %v1152, 1
      %v1214 = vrot.slane %v1159, 1
      %v1215 = vrot.slane %v1166, 1
      %v1216 = vrot.slane %v1173, 1
      %v1217 = vrot.slane %v1180, 1
      %v1218 = vsel %vm1209, 0.0, 0.0
      %v1219 = vsel %vm1209, %v1210, 0.0
      %v1220 = vsel %vm1209, %v1211, 0.0
      %v1221 = vsel %vm1209, %v1212, 0.0
      %v1222 = vsel %vm1209, %v1213, 0.0
      %v1223 = vsel %vm1209, %v1214, 0.0
      %v1224 = vsel %vm1209, %v1215, 0.0
      %v1225 = vsel %vm1209, %v1216, 0.0
      %v1226 = vsel %vm1209, %v1217, 0.0
      %v1227 = vpack.c.bf16 %v1201, %v1200
      %v1228 = vpack.c.bf16 %v1203, %v1202
      %v1229 = vpack.c.bf16 %v1205, %v1204
      %v1230 = vpack.c.bf16 %v1207, %v1206
      %v1231 = vld [vmem:[%s1] sm:$0x3]
      %v1232 = vpack.c.bf16 %v1131, 0.0
      %v1233 = vpack.c.bf16 %v1145, %v1138
      %v1234 = vpack.c.bf16 %v1159, %v1152
      %v1235 = vpack.c.bf16 %v1173, %v1166
      %s1236 = scalar_lea.vmem %s1, 2
      %v1237 = vld [vmem:[%s1236] sm:$0x3]
      %v1239 = vsel %vm204, %v1232, 0
      %v1242 = vsel %vm204, %v1233, 0
      %v1245 = vsel %vm204, %v1234, 0
      %v1248 = vsel %vm204, %v1235, 0
      %vm1250 = vcmask 1041408
      %v1252 = vsel %vm1250, %v1237, 0
      %1254 = vmatprep.subr.bf16.mxu0 0
      %1255 = vmatpush1.bf16.msra.mxu0 0
      %1256 = vmatprep.subr.bf16.mxu0 0
      %1257 = vmatpush1.bf16.msra.mxu0 0
      %1258 = vmatprep.subr.bf16.mxu0 0
      %1259 = vmatpush1.bf16.msra.mxu0 0
      %1260 = vmatprep.subr.bf16.mxu0 0
      %1261 = vmatpush1.bf16.msra.mxu0 0
      %1262 = vmatprep.subr.bf16.mxu0 0
      %1263 = vmatpush1.bf16.msra.mxu0 0
      %1264 = vmatprep.subr.bf16.mxu0 0
      %1265 = vmatpush1.bf16.msra.mxu0 0
      %1266 = vmatprep.subr.bf16.mxu0 0
      %1267 = vmatpush1.bf16.msra.mxu0 0
      %1268 = vmatprep.subr.bf16.mxu0 0
      %1269 = vmatpush1.bf16.msra.mxu0 %v1252
      %1270 = vmatprep.subr.bf16.mxu0 0
      %1271 = vmatpush2.bf16.msra.mxu0 0
      %1272 = vmatprep.subr.bf16.mxu0 0
      %1273 = vmatpush2.bf16.msra.mxu0 0
      %1274 = vmatprep.subr.bf16.mxu0 0
      %1275 = vmatpush2.bf16.msra.mxu0 0
      %1276 = vmatprep.subr.bf16.mxu0 0
      %1277 = vmatpush2.bf16.msra.mxu0 0
      %1278 = vmatprep.subr.bf16.mxu0 0
      %1279 = vmatpush2.bf16.msra.mxu0 0
      %1280 = vmatprep.subr.bf16.mxu0 0
      %1281 = vmatpush2.bf16.msra.mxu0 0
      %1282 = vmatprep.subr.bf16.mxu0 0
      %1283 = vmatpush2.bf16.msra.mxu0 0
      %1284 = vmatprep.subr.bf16.mxu0 0
      %1285 = vmatpush2.bf16.msra.mxu0 0
      %1286 = vmatprep.mubr.bf16.mxu0 0
      %1287 = vmatmul.mubr.bf16.gmra.mxu0 %v1239
      %v1288 = vpop.f32.mrf.mxu0
      %v1289 = vadd.f32 0.0, %v1288
      %v1290 = vpop.f32.mrf.mxu0
      %v1291 = vpop.f32.mrf.mxu0
      %v1292 = vadd.f32 0.0, %v1291
      %v1293 = vpop.f32.mrf.mxu0
      %1294 = vmatprep.mubr.bf16.mxu0 0
      %1295 = vmatmul.mubr.bf16.gmra.mxu0 %v1242
      %v1296 = vpop.f32.mrf.mxu0
      %v1297 = vadd.f32 0.0, %v1296
      %v1298 = vpop.f32.mrf.mxu0
      %v1299 = vpop.f32.mrf.mxu0
      %v1300 = vadd.f32 0.0, %v1299
      %v1301 = vpop.f32.mrf.mxu0
      %1302 = vmatprep.mubr.bf16.mxu0 0
      %1303 = vmatmul.mubr.bf16.gmra.mxu0 %v1245
      %v1304 = vpop.f32.mrf.mxu0
      %v1305 = vadd.f32 0.0, %v1304
      %v1306 = vpop.f32.mrf.mxu0
      %v1307 = vpop.f32.mrf.mxu0
      %v1308 = vadd.f32 0.0, %v1307
      %v1309 = vpop.f32.mrf.mxu0
      %1310 = vmatprep.mubr.bf16.mxu0 0
      %1311 = vmatmul.mubr.bf16.gmra.mxu0 %v1248
      %v1312 = vpop.f32.mrf.mxu0
      %v1313 = vadd.f32 0.0, %v1312
      %v1314 = vpop.f32.mrf.mxu0
      %v1315 = vpop.f32.mrf.mxu0
      %v1316 = vadd.f32 0.0, %v1315
      %v1317 = vpop.f32.mrf.mxu0
      %1318 = vdwg.mxu0
      %v1320 = vsel %vm204, %v1227, 0
      %v1323 = vsel %vm204, %v1228, 0
      %v1326 = vsel %vm204, %v1229, 0
      %v1329 = vsel %vm204, %v1230, 0
      %v1332 = vsel %vm1250, %v1231, 0
      %1334 = vmatprep.subr.bf16.mxu0 0
      %1335 = vmatpush1.bf16.msra.mxu0 0
      %1336 = vmatprep.subr.bf16.mxu0 0
      %1337 = vmatpush1.bf16.msra.mxu0 0
      %1338 = vmatprep.subr.bf16.mxu0 0
      %1339 = vmatpush1.bf16.msra.mxu0 0
      %1340 = vmatprep.subr.bf16.mxu0 0
      %1341 = vmatpush1.bf16.msra.mxu0 0
      %1342 = vmatprep.subr.bf16.mxu0 0
      %1343 = vmatpush1.bf16.msra.mxu0 0
      %1344 = vmatprep.subr.bf16.mxu0 0
      %1345 = vmatpush1.bf16.msra.mxu0 0
      %1346 = vmatprep.subr.bf16.mxu0 0
      %1347 = vmatpush1.bf16.msra.mxu0 0
      %1348 = vmatprep.subr.bf16.mxu0 0
      %1349 = vmatpush1.bf16.msra.mxu0 %v1332
      %1350 = vmatprep.subr.bf16.mxu0 0
      %1351 = vmatpush2.bf16.msra.mxu0 0
      %1352 = vmatprep.subr.bf16.mxu0 0
      %1353 = vmatpush2.bf16.msra.mxu0 0
      %1354 = vmatprep.subr.bf16.mxu0 0
      %1355 = vmatpush2.bf16.msra.mxu0 0
      %1356 = vmatprep.subr.bf16.mxu0 0
      %1357 = vmatpush2.bf16.msra.mxu0 0
      %1358 = vmatprep.subr.bf16.mxu0 0
      %1359 = vmatpush2.bf16.msra.mxu0 0
      %1360 = vmatprep.subr.bf16.mxu0 0
      %1361 = vmatpush2.bf16.msra.mxu0 0
      %1362 = vmatprep.subr.bf16.mxu0 0
      %1363 = vmatpush2.bf16.msra.mxu0 0
      %1364 = vmatprep.subr.bf16.mxu0 0
      %1365 = vmatpush2.bf16.msra.mxu0 0
      %1366 = vmatprep.mubr.bf16.mxu0 0
      %1367 = vmatmul.mubr.bf16.gmra.mxu0 %v1320
      %v1368 = vpop.f32.mrf.mxu0
      %v1369 = vadd.f32 %v1289, %v1368
      %v1370 = vpop.f32.mrf.mxu0
      %v1371 = vpop.f32.mrf.mxu0
      %v1372 = vadd.f32 %v1292, %v1371
      %v1373 = vpop.f32.mrf.mxu0
      %1374 = vmatprep.mubr.bf16.mxu0 0
      %1375 = vmatmul.mubr.bf16.gmra.mxu0 %v1323
      %v1376 = vpop.f32.mrf.mxu0
      %v1377 = vadd.f32 %v1297, %v1376
      %v1378 = vpop.f32.mrf.mxu0
      %v1379 = vpop.f32.mrf.mxu0
      %v1380 = vadd.f32 %v1300, %v1379
      %v1381 = vpop.f32.mrf.mxu0
      %1382 = vmatprep.mubr.bf16.mxu0 0
      %1383 = vmatmul.mubr.bf16.gmra.mxu0 %v1326
      %v1384 = vpop.f32.mrf.mxu0
      %v1385 = vadd.f32 %v1305, %v1384
      %v1386 = vpop.f32.mrf.mxu0
      %v1387 = vpop.f32.mrf.mxu0
      %v1388 = vadd.f32 %v1308, %v1387
      %v1389 = vpop.f32.mrf.mxu0
      %1390 = vmatprep.mubr.bf16.mxu0 0
      %1391 = vmatmul.mubr.bf16.gmra.mxu0 %v1329
      %v1392 = vpop.f32.mrf.mxu0
      %v1393 = vadd.f32 %v1313, %v1392
      %v1394 = vpop.f32.mrf.mxu0
      %v1395 = vpop.f32.mrf.mxu0
      %v1396 = vadd.f32 %v1316, %v1395
      %v1397 = vpop.f32.mrf.mxu0
      %1398 = vdwg.mxu0
      %v1399 = vpack.c.bf16 %v1219, %v1218
      %v1400 = vpack.c.bf16 %v1221, %v1220
      %v1401 = vpack.c.bf16 %v1223, %v1222
      %v1402 = vpack.c.bf16 %v1225, %v1224
      %s1403 = scalar_lea.vmem %s1, 4
      %v1404 = vld [vmem:[%s1403] sm:$0x3]
      %v1406 = vsel %vm204, %v1399, 0
      %v1409 = vsel %vm204, %v1400, 0
      %v1412 = vsel %vm204, %v1401, 0
      %v1415 = vsel %vm204, %v1402, 0
      %v1418 = vsel %vm1250, %v1404, 0
      %1420 = vmatprep.subr.bf16.mxu0 0
      %1421 = vmatpush1.bf16.msra.mxu0 0
      %1422 = vmatprep.subr.bf16.mxu0 0
      %1423 = vmatpush1.bf16.msra.mxu0 0
      %1424 = vmatprep.subr.bf16.mxu0 0
      %1425 = vmatpush1.bf16.msra.mxu0 0
      %1426 = vmatprep.subr.bf16.mxu0 0
      %1427 = vmatpush1.bf16.msra.mxu0 0
      %1428 = vmatprep.subr.bf16.mxu0 0
      %1429 = vmatpush1.bf16.msra.mxu0 0
      %1430 = vmatprep.subr.bf16.mxu0 0
      %1431 = vmatpush1.bf16.msra.mxu0 0
      %1432 = vmatprep.subr.bf16.mxu0 0
      %1433 = vmatpush1.bf16.msra.mxu0 0
      %1434 = vmatprep.subr.bf16.mxu0 0
      %1435 = vmatpush1.bf16.msra.mxu0 %v1418
      %1436 = vmatprep.subr.bf16.mxu0 0
      %1437 = vmatpush2.bf16.msra.mxu0 0
      %1438 = vmatprep.subr.bf16.mxu0 0
      %1439 = vmatpush2.bf16.msra.mxu0 0
      %1440 = vmatprep.subr.bf16.mxu0 0
      %1441 = vmatpush2.bf16.msra.mxu0 0
      %1442 = vmatprep.subr.bf16.mxu0 0
      %1443 = vmatpush2.bf16.msra.mxu0 0
      %1444 = vmatprep.subr.bf16.mxu0 0
      %1445 = vmatpush2.bf16.msra.mxu0 0
      %1446 = vmatprep.subr.bf16.mxu0 0
      %1447 = vmatpush2.bf16.msra.mxu0 0
      %1448 = vmatprep.subr.bf16.mxu0 0
      %1449 = vmatpush2.bf16.msra.mxu0 0
      %1450 = vmatprep.subr.bf16.mxu0 0
      %1451 = vmatpush2.bf16.msra.mxu0 0
      %1452 = vmatprep.mubr.bf16.mxu0 0
      %1453 = vmatmul.mubr.bf16.gmra.mxu0 %v1406
      %v1454 = vpop.f32.mrf.mxu0
      %v1455 = vadd.f32 0.0, %v1454
      %v1456 = vpop.f32.mrf.mxu0
      %v1457 = vpop.f32.mrf.mxu0
      %v1458 = vadd.f32 0.0, %v1457
      %v1459 = vpop.f32.mrf.mxu0
      %1460 = vmatprep.mubr.bf16.mxu0 0
      %1461 = vmatmul.mubr.bf16.gmra.mxu0 %v1409
      %v1462 = vpop.f32.mrf.mxu0
      %v1463 = vadd.f32 0.0, %v1462
      %v1464 = vpop.f32.mrf.mxu0
      %v1465 = vpop.f32.mrf.mxu0
      %v1466 = vadd.f32 0.0, %v1465
      %v1467 = vpop.f32.mrf.mxu0
      %1468 = vmatprep.mubr.bf16.mxu0 0
      %1469 = vmatmul.mubr.bf16.gmra.mxu0 %v1412
      %v1470 = vpop.f32.mrf.mxu0
      %v1471 = vadd.f32 0.0, %v1470
      %v1472 = vpop.f32.mrf.mxu0
      %v1473 = vpop.f32.mrf.mxu0
      %v1474 = vadd.f32 0.0, %v1473
      %v1475 = vpop.f32.mrf.mxu0
      %1476 = vmatprep.mubr.bf16.mxu0 0
      %1477 = vmatmul.mubr.bf16.gmra.mxu0 %v1415
      %v1478 = vpop.f32.mrf.mxu0
      %v1479 = vadd.f32 0.0, %v1478
      %v1480 = vpop.f32.mrf.mxu0
      %v1481 = vpop.f32.mrf.mxu0
      %v1482 = vadd.f32 0.0, %v1481
      %v1483 = vpop.f32.mrf.mxu0
      %1484 = vdwg.mxu0
      %v1485 = vadd.f32 %v1369, %v1455
      %v1486 = vadd.f32 %v1372, %v1458
      %v1487 = vadd.f32 %v1377, %v1463
      %v1488 = vadd.f32 %v1380, %v1466
      %v1489 = vadd.f32 %v1385, %v1471
      %v1490 = vadd.f32 %v1388, %v1474
      %v1491 = vadd.f32 %v1393, %v1479
      %v1492 = vadd.f32 %v1396, %v1482
      %v1493 = vpack.c.bf16 %v1202, %v1201
      %v1494 = vpack.c.bf16 %v1204, %v1203
      %v1495 = vpack.c.bf16 %v1206, %v1205
      %v1496 = vpack.c.bf16 %v1208, %v1207
      %s1497 = scalar_lea.vmem %s1, 6
      %v1498 = vld [vmem:[%s1497] sm:$0x3]
      %v1500 = vsel %vm204, %v1493, 0
      %v1503 = vsel %vm204, %v1494, 0
      %v1506 = vsel %vm204, %v1495, 0
      %v1509 = vsel %vm204, %v1496, 0
      %v1512 = vsel %vm1250, %v1498, 0
      %1514 = vmatprep.subr.bf16.mxu0 0
      %1515 = vmatpush1.bf16.msra.mxu0 0
      %1516 = vmatprep.subr.bf16.mxu0 0
      %1517 = vmatpush1.bf16.msra.mxu0 0
      %1518 = vmatprep.subr.bf16.mxu0 0
      %1519 = vmatpush1.bf16.msra.mxu0 0
      %1520 = vmatprep.subr.bf16.mxu0 0
      %1521 = vmatpush1.bf16.msra.mxu0 0
      %1522 = vmatprep.subr.bf16.mxu0 0
      %1523 = vmatpush1.bf16.msra.mxu0 0
      %1524 = vmatprep.subr.bf16.mxu0 0
      %1525 = vmatpush1.bf16.msra.mxu0 0
      %1526 = vmatprep.subr.bf16.mxu0 0
      %1527 = vmatpush1.bf16.msra.mxu0 0
      %1528 = vmatprep.subr.bf16.mxu0 0
      %1529 = vmatpush1.bf16.msra.mxu0 %v1512
      %1530 = vmatprep.subr.bf16.mxu0 0
      %1531 = vmatpush2.bf16.msra.mxu0 0
      %1532 = vmatprep.subr.bf16.mxu0 0
      %1533 = vmatpush2.bf16.msra.mxu0 0
      %1534 = vmatprep.subr.bf16.mxu0 0
      %1535 = vmatpush2.bf16.msra.mxu0 0
      %1536 = vmatprep.subr.bf16.mxu0 0
      %1537 = vmatpush2.bf16.msra.mxu0 0
      %1538 = vmatprep.subr.bf16.mxu0 0
      %1539 = vmatpush2.bf16.msra.mxu0 0
      %1540 = vmatprep.subr.bf16.mxu0 0
      %1541 = vmatpush2.bf16.msra.mxu0 0
      %1542 = vmatprep.subr.bf16.mxu0 0
      %1543 = vmatpush2.bf16.msra.mxu0 0
      %1544 = vmatprep.subr.bf16.mxu0 0
      %1545 = vmatpush2.bf16.msra.mxu0 0
      %1546 = vmatprep.mubr.bf16.mxu0 0
      %1547 = vmatmul.mubr.bf16.gmra.mxu0 %v1500
      %v1548 = vpop.f32.mrf.mxu0
      %v1549 = vadd.f32 0.0, %v1548
      %v1550 = vpop.f32.mrf.mxu0
      %v1551 = vpop.f32.mrf.mxu0
      %v1552 = vadd.f32 0.0, %v1551
      %v1553 = vpop.f32.mrf.mxu0
      %1554 = vmatprep.mubr.bf16.mxu0 0
      %1555 = vmatmul.mubr.bf16.gmra.mxu0 %v1503
      %v1556 = vpop.f32.mrf.mxu0
      %v1557 = vadd.f32 0.0, %v1556
      %v1558 = vpop.f32.mrf.mxu0
      %v1559 = vpop.f32.mrf.mxu0
      %v1560 = vadd.f32 0.0, %v1559
      %v1561 = vpop.f32.mrf.mxu0
      %1562 = vmatprep.mubr.bf16.mxu0 0
      %1563 = vmatmul.mubr.bf16.gmra.mxu0 %v1506
      %v1564 = vpop.f32.mrf.mxu0
      %v1565 = vadd.f32 0.0, %v1564
      %v1566 = vpop.f32.mrf.mxu0
      %v1567 = vpop.f32.mrf.mxu0
      %v1568 = vadd.f32 0.0, %v1567
      %v1569 = vpop.f32.mrf.mxu0
      %1570 = vmatprep.mubr.bf16.mxu0 0
      %1571 = vmatmul.mubr.bf16.gmra.mxu0 %v1509
      %v1572 = vpop.f32.mrf.mxu0
      %v1573 = vadd.f32 0.0, %v1572
      %v1574 = vpop.f32.mrf.mxu0
      %v1575 = vpop.f32.mrf.mxu0
      %v1576 = vadd.f32 0.0, %v1575
      %v1577 = vpop.f32.mrf.mxu0
      %1578 = vdwg.mxu0
      %v1579 = vadd.f32 %v1485, %v1549
      %v1580 = vadd.f32 %v1486, %v1552
      %v1581 = vadd.f32 %v1487, %v1557
      %v1582 = vadd.f32 %v1488, %v1560
      %v1583 = vadd.f32 %v1489, %v1565
      %v1584 = vadd.f32 %v1490, %v1568
      %v1585 = vadd.f32 %v1491, %v1573
      %v1586 = vadd.f32 %v1492, %v1576
      %v1587 = vpack.c.bf16 %v1138, %v1131
      %v1588 = vpack.c.bf16 %v1152, %v1145
      %v1589 = vpack.c.bf16 %v1166, %v1159
      %v1590 = vpack.c.bf16 %v1180, %v1173
      %s1591 = scalar_lea.vmem %s1, 8
      %v1592 = vld [vmem:[%s1591] sm:$0x3]
      %v1594 = vsel %vm204, %v1587, 0
      %v1597 = vsel %vm204, %v1588, 0
      %v1600 = vsel %vm204, %v1589, 0
      %v1603 = vsel %vm204, %v1590, 0
      %v1606 = vsel %vm1250, %v1592, 0
      %1608 = vmatprep.subr.bf16.mxu0 0
      %1609 = vmatpush1.bf16.msra.mxu0 0
      %1610 = vmatprep.subr.bf16.mxu0 0
      %1611 = vmatpush1.bf16.msra.mxu0 0
      %1612 = vmatprep.subr.bf16.mxu0 0
      %1613 = vmatpush1.bf16.msra.mxu0 0
      %1614 = vmatprep.subr.bf16.mxu0 0
      %1615 = vmatpush1.bf16.msra.mxu0 0
      %1616 = vmatprep.subr.bf16.mxu0 0
      %1617 = vmatpush1.bf16.msra.mxu0 0
      %1618 = vmatprep.subr.bf16.mxu0 0
      %1619 = vmatpush1.bf16.msra.mxu0 0
      %1620 = vmatprep.subr.bf16.mxu0 0
      %1621 = vmatpush1.bf16.msra.mxu0 0
      %1622 = vmatprep.subr.bf16.mxu0 0
      %1623 = vmatpush1.bf16.msra.mxu0 %v1606
      %1624 = vmatprep.subr.bf16.mxu0 0
      %1625 = vmatpush2.bf16.msra.mxu0 0
      %1626 = vmatprep.subr.bf16.mxu0 0
      %1627 = vmatpush2.bf16.msra.mxu0 0
      %1628 = vmatprep.subr.bf16.mxu0 0
      %1629 = vmatpush2.bf16.msra.mxu0 0
      %1630 = vmatprep.subr.bf16.mxu0 0
      %1631 = vmatpush2.bf16.msra.mxu0 0
      %1632 = vmatprep.subr.bf16.mxu0 0
      %1633 = vmatpush2.bf16.msra.mxu0 0
      %1634 = vmatprep.subr.bf16.mxu0 0
      %1635 = vmatpush2.bf16.msra.mxu0 0
      %1636 = vmatprep.subr.bf16.mxu0 0
      %1637 = vmatpush2.bf16.msra.mxu0 0
      %1638 = vmatprep.subr.bf16.mxu0 0
      %1639 = vmatpush2.bf16.msra.mxu0 0
      %1640 = vmatprep.mubr.bf16.mxu0 0
      %1641 = vmatmul.mubr.bf16.gmra.mxu0 %v1594
      %v1642 = vpop.f32.mrf.mxu0
      %v1643 = vadd.f32 0.0, %v1642
      %v1644 = vpop.f32.mrf.mxu0
      %v1645 = vpop.f32.mrf.mxu0
      %v1646 = vadd.f32 0.0, %v1645
      %v1647 = vpop.f32.mrf.mxu0
      %1648 = vmatprep.mubr.bf16.mxu0 0
      %1649 = vmatmul.mubr.bf16.gmra.mxu0 %v1597
      %v1650 = vpop.f32.mrf.mxu0
      %v1651 = vadd.f32 0.0, %v1650
      %v1652 = vpop.f32.mrf.mxu0
      %v1653 = vpop.f32.mrf.mxu0
      %v1654 = vadd.f32 0.0, %v1653
      %v1655 = vpop.f32.mrf.mxu0
      %1656 = vmatprep.mubr.bf16.mxu0 0
      %1657 = vmatmul.mubr.bf16.gmra.mxu0 %v1600
      %v1658 = vpop.f32.mrf.mxu0
      %v1659 = vadd.f32 0.0, %v1658
      %v1660 = vpop.f32.mrf.mxu0
      %v1661 = vpop.f32.mrf.mxu0
      %v1662 = vadd.f32 0.0, %v1661
      %v1663 = vpop.f32.mrf.mxu0
      %1664 = vmatprep.mubr.bf16.mxu0 0
      %1665 = vmatmul.mubr.bf16.gmra.mxu0 %v1603
      %v1666 = vpop.f32.mrf.mxu0
      %v1667 = vadd.f32 0.0, %v1666
      %v1668 = vpop.f32.mrf.mxu0
      %v1669 = vpop.f32.mrf.mxu0
      %v1670 = vadd.f32 0.0, %v1669
      %v1671 = vpop.f32.mrf.mxu0
      %1672 = vdwg.mxu0
      %v1673 = vadd.f32 %v1579, %v1643
      %v1674 = vadd.f32 %v1580, %v1646
      %v1675 = vadd.f32 %v1581, %v1651
      %v1676 = vadd.f32 %v1582, %v1654
      %v1677 = vadd.f32 %v1583, %v1659
      %v1678 = vadd.f32 %v1584, %v1662
      %v1679 = vadd.f32 %v1585, %v1667
      %v1680 = vadd.f32 %v1586, %v1670
      %v1681 = vpack.c.bf16 %v1220, %v1219
      %v1682 = vpack.c.bf16 %v1222, %v1221
      %v1683 = vpack.c.bf16 %v1224, %v1223
      %v1684 = vpack.c.bf16 %v1226, %v1225
      %s1685 = scalar_lea.vmem %s1, 10
      %v1686 = vld [vmem:[%s1685] sm:$0x3]
      %v1688 = vsel %vm204, %v1681, 0
      %v1691 = vsel %vm204, %v1682, 0
      %v1694 = vsel %vm204, %v1683, 0
      %v1697 = vsel %vm204, %v1684, 0
      %v1700 = vsel %vm1250, %v1686, 0
      %1702 = vmatprep.subr.bf16.mxu0 0
      %1703 = vmatpush1.bf16.msra.mxu0 0
      %1704 = vmatprep.subr.bf16.mxu0 0
      %1705 = vmatpush1.bf16.msra.mxu0 0
      %1706 = vmatprep.subr.bf16.mxu0 0
      %1707 = vmatpush1.bf16.msra.mxu0 0
      %1708 = vmatprep.subr.bf16.mxu0 0
      %1709 = vmatpush1.bf16.msra.mxu0 0
      %1710 = vmatprep.subr.bf16.mxu0 0
      %1711 = vmatpush1.bf16.msra.mxu0 0
      %1712 = vmatprep.subr.bf16.mxu0 0
      %1713 = vmatpush1.bf16.msra.mxu0 0
      %1714 = vmatprep.subr.bf16.mxu0 0
      %1715 = vmatpush1.bf16.msra.mxu0 0
      %1716 = vmatprep.subr.bf16.mxu0 0
      %1717 = vmatpush1.bf16.msra.mxu0 %v1700
      %1718 = vmatprep.subr.bf16.mxu0 0
      %1719 = vmatpush2.bf16.msra.mxu0 0
      %1720 = vmatprep.subr.bf16.mxu0 0
      %1721 = vmatpush2.bf16.msra.mxu0 0
      %1722 = vmatprep.subr.bf16.mxu0 0
      %1723 = vmatpush2.bf16.msra.mxu0 0
      %1724 = vmatprep.subr.bf16.mxu0 0
      %1725 = vmatpush2.bf16.msra.mxu0 0
      %1726 = vmatprep.subr.bf16.mxu0 0
      %1727 = vmatpush2.bf16.msra.mxu0 0
      %1728 = vmatprep.subr.bf16.mxu0 0
      %1729 = vmatpush2.bf16.msra.mxu0 0
      %1730 = vmatprep.subr.bf16.mxu0 0
      %1731 = vmatpush2.bf16.msra.mxu0 0
      %1732 = vmatprep.subr.bf16.mxu0 0
      %1733 = vmatpush2.bf16.msra.mxu0 0
      %1734 = vmatprep.mubr.bf16.mxu0 0
      %1735 = vmatmul.mubr.bf16.gmra.mxu0 %v1688
      %v1736 = vpop.f32.mrf.mxu0
      %v1737 = vadd.f32 0.0, %v1736
      %v1738 = vpop.f32.mrf.mxu0
      %v1739 = vpop.f32.mrf.mxu0
      %v1740 = vadd.f32 0.0, %v1739
      %v1741 = vpop.f32.mrf.mxu0
      %1742 = vmatprep.mubr.bf16.mxu0 0
      %1743 = vmatmul.mubr.bf16.gmra.mxu0 %v1691
      %v1744 = vpop.f32.mrf.mxu0
      %v1745 = vadd.f32 0.0, %v1744
      %v1746 = vpop.f32.mrf.mxu0
      %v1747 = vpop.f32.mrf.mxu0
      %v1748 = vadd.f32 0.0, %v1747
      %v1749 = vpop.f32.mrf.mxu0
      %1750 = vmatprep.mubr.bf16.mxu0 0
      %1751 = vmatmul.mubr.bf16.gmra.mxu0 %v1694
      %v1752 = vpop.f32.mrf.mxu0
      %v1753 = vadd.f32 0.0, %v1752
      %v1754 = vpop.f32.mrf.mxu0
      %v1755 = vpop.f32.mrf.mxu0
      %v1756 = vadd.f32 0.0, %v1755
      %v1757 = vpop.f32.mrf.mxu0
      %1758 = vmatprep.mubr.bf16.mxu0 0
      %1759 = vmatmul.mubr.bf16.gmra.mxu0 %v1697
      %v1760 = vpop.f32.mrf.mxu0
      %v1761 = vadd.f32 0.0, %v1760
      %v1762 = vpop.f32.mrf.mxu0
      %v1763 = vpop.f32.mrf.mxu0
      %v1764 = vadd.f32 0.0, %v1763
      %v1765 = vpop.f32.mrf.mxu0
      %1766 = vdwg.mxu0
      %v1767 = vadd.f32 %v1673, %v1737
      %v1768 = vadd.f32 %v1674, %v1740
      %v1769 = vadd.f32 %v1675, %v1745
      %v1770 = vadd.f32 %v1676, %v1748
      %v1771 = vadd.f32 %v1677, %v1753
      %v1772 = vadd.f32 %v1678, %v1756
      %v1773 = vadd.f32 %v1679, %v1761
      %v1774 = vadd.f32 %v1680, %v1764
      %v1775 = vpack.c.bf16 %v1200, %v1208
      %s1776 = scalar_lea.vmem %s1, 12
      %v1777 = vld [vmem:[%s1776] sm:$0x3]
      %v1779 = vsel %vm204, %v1775, 0
      %v1782 = vsel %vm1250, %v1777, 0
      %1784 = vmatprep.subr.bf16.mxu0 0
      %1785 = vmatpush1.bf16.msra.mxu0 0
      %1786 = vmatprep.subr.bf16.mxu0 0
      %1787 = vmatpush1.bf16.msra.mxu0 0
      %1788 = vmatprep.subr.bf16.mxu0 0
      %1789 = vmatpush1.bf16.msra.mxu0 0
      %1790 = vmatprep.subr.bf16.mxu0 0
      %1791 = vmatpush1.bf16.msra.mxu0 0
      %1792 = vmatprep.subr.bf16.mxu0 0
      %1793 = vmatpush1.bf16.msra.mxu0 0
      %1794 = vmatprep.subr.bf16.mxu0 0
      %1795 = vmatpush1.bf16.msra.mxu0 0
      %1796 = vmatprep.subr.bf16.mxu0 0
      %1797 = vmatpush1.bf16.msra.mxu0 0
      %1798 = vmatprep.subr.bf16.mxu0 0
      %1799 = vmatpush1.bf16.msra.mxu0 %v1782
      %1800 = vmatprep.subr.bf16.mxu0 0
      %1801 = vmatpush2.bf16.msra.mxu0 0
      %1802 = vmatprep.subr.bf16.mxu0 0
      %1803 = vmatpush2.bf16.msra.mxu0 0
      %1804 = vmatprep.subr.bf16.mxu0 0
      %1805 = vmatpush2.bf16.msra.mxu0 0
      %1806 = vmatprep.subr.bf16.mxu0 0
      %1807 = vmatpush2.bf16.msra.mxu0 0
      %1808 = vmatprep.subr.bf16.mxu0 0
      %1809 = vmatpush2.bf16.msra.mxu0 0
      %1810 = vmatprep.subr.bf16.mxu0 0
      %1811 = vmatpush2.bf16.msra.mxu0 0
      %1812 = vmatprep.subr.bf16.mxu0 0
      %1813 = vmatpush2.bf16.msra.mxu0 0
      %1814 = vmatprep.subr.bf16.mxu0 0
      %1815 = vmatpush2.bf16.msra.mxu0 0
      %1816 = vmatprep.mubr.bf16.mxu0 0
      %1817 = vmatmul.mubr.bf16.gmra.mxu0 %v1323
      %v1818 = vpop.f32.mrf.mxu0
      %v1819 = vadd.f32 0.0, %v1818
      %v1820 = vpop.f32.mrf.mxu0
      %v1821 = vpop.f32.mrf.mxu0
      %v1822 = vadd.f32 0.0, %v1821
      %v1823 = vpop.f32.mrf.mxu0
      %1824 = vmatprep.mubr.bf16.mxu0 0
      %1825 = vmatmul.mubr.bf16.gmra.mxu0 %v1326
      %v1826 = vpop.f32.mrf.mxu0
      %v1827 = vadd.f32 0.0, %v1826
      %v1828 = vpop.f32.mrf.mxu0
      %v1829 = vpop.f32.mrf.mxu0
      %v1830 = vadd.f32 0.0, %v1829
      %v1831 = vpop.f32.mrf.mxu0
      %1832 = vmatprep.mubr.bf16.mxu0 0
      %1833 = vmatmul.mubr.bf16.gmra.mxu0 %v1329
      %v1834 = vpop.f32.mrf.mxu0
      %v1835 = vadd.f32 0.0, %v1834
      %v1836 = vpop.f32.mrf.mxu0
      %v1837 = vpop.f32.mrf.mxu0
      %v1838 = vadd.f32 0.0, %v1837
      %v1839 = vpop.f32.mrf.mxu0
      %1840 = vmatprep.mubr.bf16.mxu0 0
      %1841 = vmatmul.mubr.bf16.gmra.mxu0 %v1779
      %v1842 = vpop.f32.mrf.mxu0
      %v1843 = vadd.f32 0.0, %v1842
      %v1844 = vpop.f32.mrf.mxu0
      %v1845 = vpop.f32.mrf.mxu0
      %v1846 = vadd.f32 0.0, %v1845
      %v1847 = vpop.f32.mrf.mxu0
      %1848 = vdwg.mxu0
      %v1849 = vadd.f32 %v1767, %v1819
      %v1850 = vadd.f32 %v1768, %v1822
      %v1851 = vadd.f32 %v1769, %v1827
      %v1852 = vadd.f32 %v1770, %v1830
      %v1853 = vadd.f32 %v1771, %v1835
      %v1854 = vadd.f32 %v1772, %v1838
      %v1855 = vadd.f32 %v1773, %v1843
      %v1856 = vadd.f32 %v1774, %v1846
      %v1857 = vpack.c.bf16 0.0, %v1180
      %s1858 = scalar_lea.vmem %s1, 14
      %v1859 = vld [vmem:[%s1858] sm:$0x3]
      %v1861 = vsel %vm204, %v1857, 0
      %v1864 = vsel %vm1250, %v1859, 0
      %1866 = vmatprep.subr.bf16.mxu0 0
      %1867 = vmatpush1.bf16.msra.mxu0 0
      %1868 = vmatprep.subr.bf16.mxu0 0
      %1869 = vmatpush1.bf16.msra.mxu0 0
      %1870 = vmatprep.subr.bf16.mxu0 0
      %1871 = vmatpush1.bf16.msra.mxu0 0
      %1872 = vmatprep.subr.bf16.mxu0 0
      %1873 = vmatpush1.bf16.msra.mxu0 0
      %1874 = vmatprep.subr.bf16.mxu0 0
      %1875 = vmatpush1.bf16.msra.mxu0 0
      %1876 = vmatprep.subr.bf16.mxu0 0
      %1877 = vmatpush1.bf16.msra.mxu0 0
      %1878 = vmatprep.subr.bf16.mxu0 0
      %1879 = vmatpush1.bf16.msra.mxu0 0
      %1880 = vmatprep.subr.bf16.mxu0 0
      %1881 = vmatpush1.bf16.msra.mxu0 %v1864
      %1882 = vmatprep.subr.bf16.mxu0 0
      %1883 = vmatpush2.bf16.msra.mxu0 0
      %1884 = vmatprep.subr.bf16.mxu0 0
      %1885 = vmatpush2.bf16.msra.mxu0 0
      %1886 = vmatprep.subr.bf16.mxu0 0
      %1887 = vmatpush2.bf16.msra.mxu0 0
      %1888 = vmatprep.subr.bf16.mxu0 0
      %1889 = vmatpush2.bf16.msra.mxu0 0
      %1890 = vmatprep.subr.bf16.mxu0 0
      %1891 = vmatpush2.bf16.msra.mxu0 0
      %1892 = vmatprep.subr.bf16.mxu0 0
      %1893 = vmatpush2.bf16.msra.mxu0 0
      %1894 = vmatprep.subr.bf16.mxu0 0
      %1895 = vmatpush2.bf16.msra.mxu0 0
      %1896 = vmatprep.subr.bf16.mxu0 0
      %1897 = vmatpush2.bf16.msra.mxu0 0
      %1898 = vmatprep.mubr.bf16.mxu0 0
      %1899 = vmatmul.mubr.bf16.gmra.mxu0 %v1242
      %v1900 = vpop.f32.mrf.mxu0
      %v1901 = vadd.f32 0.0, %v1900
      %v1902 = vpop.f32.mrf.mxu0
      %v1903 = vpop.f32.mrf.mxu0
      %v1904 = vadd.f32 0.0, %v1903
      %v1905 = vpop.f32.mrf.mxu0
      %1906 = vmatprep.mubr.bf16.mxu0 0
      %1907 = vmatmul.mubr.bf16.gmra.mxu0 %v1245
      %v1908 = vpop.f32.mrf.mxu0
      %v1909 = vadd.f32 0.0, %v1908
      %v1910 = vpop.f32.mrf.mxu0
      %v1911 = vpop.f32.mrf.mxu0
      %v1912 = vadd.f32 0.0, %v1911
      %v1913 = vpop.f32.mrf.mxu0
      %1914 = vmatprep.mubr.bf16.mxu0 0
      %1915 = vmatmul.mubr.bf16.gmra.mxu0 %v1248
      %v1916 = vpop.f32.mrf.mxu0
      %v1917 = vadd.f32 0.0, %v1916
      %v1918 = vpop.f32.mrf.mxu0
      %v1919 = vpop.f32.mrf.mxu0
      %v1920 = vadd.f32 0.0, %v1919
      %v1921 = vpop.f32.mrf.mxu0
      %1922 = vmatprep.mubr.bf16.mxu0 0
      %1923 = vmatmul.mubr.bf16.gmra.mxu0 %v1861
      %v1924 = vpop.f32.mrf.mxu0
      %v1925 = vadd.f32 0.0, %v1924
      %v1926 = vpop.f32.mrf.mxu0
      %v1927 = vpop.f32.mrf.mxu0
      %v1928 = vadd.f32 0.0, %v1927
      %v1929 = vpop.f32.mrf.mxu0
      %1930 = vdwg.mxu0
      %v1931 = vadd.f32 %v1849, %v1901
      %v1932 = vadd.f32 %v1850, %v1904
      %v1933 = vadd.f32 %v1851, %v1909
      %v1934 = vadd.f32 %v1852, %v1912
      %v1935 = vadd.f32 %v1853, %v1917
      %v1936 = vadd.f32 %v1854, %v1920
      %v1937 = vadd.f32 %v1855, %v1925
      %v1938 = vadd.f32 %v1856, %v1928
      %v1939 = vpack.c.bf16 %v1218, %v1226
      %s1940 = scalar_lea.vmem %s1, 16
      %v1941 = vld [vmem:[%s1940] sm:$0x3]
      %v1943 = vsel %vm204, %v1939, 0
      %v1946 = vsel %vm1250, %v1941, 0
      %1948 = vmatprep.subr.bf16.mxu0 0
      %1949 = vmatpush1.bf16.msra.mxu0 0
      %1950 = vmatprep.subr.bf16.mxu0 0
      %1951 = vmatpush1.bf16.msra.mxu0 0
      %1952 = vmatprep.subr.bf16.mxu0 0
      %1953 = vmatpush1.bf16.msra.mxu0 0
      %1954 = vmatprep.subr.bf16.mxu0 0
      %1955 = vmatpush1.bf16.msra.mxu0 0
      %1956 = vmatprep.subr.bf16.mxu0 0
      %1957 = vmatpush1.bf16.msra.mxu0 0
      %1958 = vmatprep.subr.bf16.mxu0 0
      %1959 = vmatpush1.bf16.msra.mxu0 0
      %1960 = vmatprep.subr.bf16.mxu0 0
      %1961 = vmatpush1.bf16.msra.mxu0 0
      %1962 = vmatprep.subr.bf16.mxu0 0
      %1963 = vmatpush1.bf16.msra.mxu0 %v1946
      %1964 = vmatprep.subr.bf16.mxu0 0
      %1965 = vmatpush2.bf16.msra.mxu0 0
      %1966 = vmatprep.subr.bf16.mxu0 0
      %1967 = vmatpush2.bf16.msra.mxu0 0
      %1968 = vmatprep.subr.bf16.mxu0 0
      %1969 = vmatpush2.bf16.msra.mxu0 0
      %1970 = vmatprep.subr.bf16.mxu0 0
      %1971 = vmatpush2.bf16.msra.mxu0 0
      %1972 = vmatprep.subr.bf16.mxu0 0
      %1973 = vmatpush2.bf16.msra.mxu0 0
      %1974 = vmatprep.subr.bf16.mxu0 0
      %1975 = vmatpush2.bf16.msra.mxu0 0
      %1976 = vmatprep.subr.bf16.mxu0 0
      %1977 = vmatpush2.bf16.msra.mxu0 0
      %1978 = vmatprep.subr.bf16.mxu0 0
      %1979 = vmatpush2.bf16.msra.mxu0 0
      %1980 = vmatprep.mubr.bf16.mxu0 0
      %1981 = vmatmul.mubr.bf16.gmra.mxu0 %v1409
      %v1982 = vpop.f32.mrf.mxu0
      %v1983 = vadd.f32 0.0, %v1982
      %v1984 = vpop.f32.mrf.mxu0
      %v1985 = vpop.f32.mrf.mxu0
      %v1986 = vadd.f32 0.0, %v1985
      %v1987 = vpop.f32.mrf.mxu0
      %1988 = vmatprep.mubr.bf16.mxu0 0
      %1989 = vmatmul.mubr.bf16.gmra.mxu0 %v1412
      %v1990 = vpop.f32.mrf.mxu0
      %v1991 = vadd.f32 0.0, %v1990
      %v1992 = vpop.f32.mrf.mxu0
      %v1993 = vpop.f32.mrf.mxu0
      %v1994 = vadd.f32 0.0, %v1993
      %v1995 = vpop.f32.mrf.mxu0
      %1996 = vmatprep.mubr.bf16.mxu0 0
      %1997 = vmatmul.mubr.bf16.gmra.mxu0 %v1415
      %v1998 = vpop.f32.mrf.mxu0
      %v1999 = vadd.f32 0.0, %v1998
      %v2000 = vpop.f32.mrf.mxu0
      %v2001 = vpop.f32.mrf.mxu0
      %v2002 = vadd.f32 0.0, %v2001
      %v2003 = vpop.f32.mrf.mxu0
      %2004 = vmatprep.mubr.bf16.mxu0 0
      %2005 = vmatmul.mubr.bf16.gmra.mxu0 %v1943
      %v2006 = vpop.f32.mrf.mxu0
      %v2007 = vadd.f32 0.0, %v2006
      %v2008 = vpop.f32.mrf.mxu0
      %v2009 = vpop.f32.mrf.mxu0
      %v2010 = vadd.f32 0.0, %v2009
      %v2011 = vpop.f32.mrf.mxu0
      %2012 = vdwg.mxu0
      %v2013 = vadd.f32 %v1931, %v1983
      %v2014 = vadd.f32 %v1932, %v1986
      %v2015 = vadd.f32 %v1933, %v1991
      %v2016 = vadd.f32 %v1934, %v1994
      %v2017 = vadd.f32 %v1935, %v1999
      %v2018 = vadd.f32 %v1936, %v2002
      %v2019 = vadd.f32 %v1937, %v2007
      %v2020 = vadd.f32 %v1938, %v2010
      %v2021 = vld [vmem:[%s2] sm:$0x1]
      %v2023 = vlaneseq
      %v2024 = vshrl.u32 %v2023, 7
      %v2025 = vsub.s32 0, %v2024
      %v2026 = vrot.slane %v2021, %v2025
      %v2028 = vadd.f32 %v2013, %v2026
      %v2029 = vadd.f32 %v2014, %v2026
      %v2030 = vadd.f32 %v2015, %v2026
      %v2031 = vadd.f32 %v2016, %v2026
      %v2032 = vadd.f32 %v2017, %v2026
      %v2033 = vadd.f32 %v2018, %v2026
      %v2034 = vadd.f32 %v2019, %v2026
      %v2035 = vadd.f32 %v2020, %v2026
      %v2036 = vmax.f32 %v2028, 0.0
      %v2037 = vmax.f32 %v2029, 0.0
      %v2038 = vmax.f32 %v2030, 0.0
      %v2039 = vmax.f32 %v2031, 0.0
      %v2040 = vmax.f32 %v2032, 0.0
      %v2041 = vmax.f32 %v2033, 0.0
      %v2042 = vmax.f32 %v2034, 0.0
      %v2043 = vmax.f32 %v2035, 0.0
      %2044 = vst [vmem:[%s170] sm:$0xff] %v2036
      %2045 = vst [vmem:[%s170 + $0x8] sm:$0xff] %v2037
      %2046 = vst [vmem:[%s170 + $0x10] sm:$0xff] %v2038
      %2047 = vst [vmem:[%s170 + $0x18] sm:$0xff] %v2039
      %2048 = vst [vmem:[%s170 + $0x20] sm:$0xff] %v2040
      %2049 = vst [vmem:[%s170 + $0x28] sm:$0xff] %v2041
      %2050 = vst [vmem:[%s170 + $0x30] sm:$0xff] %v2042
      %2051 = vst [vmem:[%s170 + $0x38] sm:$0xff] %v2043
      %p2052 = scmp.lt.s32.totalorder %s14, 1
      %s2053 = scalar_select %p2052, %s14, 1
      %s2054 = smul.addr %s2053, 8
      %s2055 = smul.addr %s2054, 8
      %s2056 = scalar_lea.vmem %s3, %s2055
      // Predicated region
      $region33: #{udown_forward.1} parent=31 // pred_check
        %p2057 = pneg %p100
      $region34: #{udown_forward.1} parent=31 // pred_check_branch
        %2059 = sbr.rel (%p2057) target = $region36
      $region35: #{udown_forward.1} parent=31 // pred_region
        _
      $region36: #{udown_forward.1} parent=31 // pred_fallthru
        _
    $region32: #{udown_forward.1} parent=5 // pred_fallthru
      _
    %p2060 = scmp.le.s32.totalorder 2, %s9
    // Predicated region
    $region37: #{udown_forward.1} parent=5 // pred_check
      %p2061 = pneg %p2060
    $region38: #{udown_forward.1} parent=5 // pred_check_branch
      %2063 = sbr.rel (%p2061) target = $region40
    $region39: #{udown_forward.1} parent=5 // pred_region
      %s2064 = ssub.s32 %s9, 2
      // Predicated region
      $region41: #{udown_forward.1} parent=39 // pred_check
        %p2065 = pneg %p106
      $region42: #{udown_forward.1} parent=39 // pred_check_branch
        %2067 = sbr.rel (%p2065) target = $region44
      $region43: #{udown_forward.1} parent=39 // pred_region
        %p2068 = scmp.lt.s32.totalorder %s15, 1
        %s2069 = scalar_select %p2068, %s15, 1
        %s2070 = smul.addr %s2069, 8
        %s2071 = smul.addr %s2070, 8
        %s2072 = scalar_lea.vmem %s3, %s2071
      $region44: #{udown_forward.1} parent=39 // pred_fallthru
        _
    $region40: #{udown_forward.1} parent=5 // pred_fallthru
      _
  $region6: #{udown_forward.1} parent=0 // loop_footer
    %s13 = sadd.s32 1, %s9
  $region7: #{udown_forward.1} parent=0 // loop_footer_branch
    %8 = sbr.rel target = $region3
  $region8: #{udown_forward.1} parent=0 // loop_exit
    _

</llo_original>
